<compile_context>
chip_gen: v6e
topology: v6e:2x2x1
jax: 0.10.0
libtpu: 0.0.40
codegen_flags: <defaults>
</compile_context>

<pallas_src>
import functools
import math

import jax
import jax.numpy as jnp
from jax.experimental import pallas as pl
from jax.experimental.pallas import tpu as pltpu


# ---------------------------------------------------------------------------
# Stage 1: fused Q/K/V projection kernel.
# ---------------------------------------------------------------------------
def _qkv_proj_kernel(q_ref, k_ref, v_ref, wq_ref, wk_ref, wv_ref,
                     bq_ref, bk_ref, bv_ref, qo_ref, ko_ref, vo_ref, *, scale):
    """One grid step = one (batch, row-tile). Weights are VMEM-resident."""
    def proj(x_ref, w_ref, b_ref, o_ref, s=None):
        x = x_ref[0].astype(w_ref.dtype)                       # (TP, D)
        y = jnp.dot(x, w_ref[...], preferred_element_type=jnp.float32)
        y = y + b_ref[...]                                     # f32 bias add
        if s is not None:
            y = y * s                                          # fold 1/sqrt(dk) into Q
        o_ref[0] = y.astype(o_ref.dtype)

    proj(q_ref, wq_ref, bq_ref, qo_ref, s=scale)
    proj(k_ref, wk_ref, bk_ref, ko_ref)
    proj(v_ref, wv_ref, bv_ref, vo_ref)


# ---------------------------------------------------------------------------
# Stage 2: attention + fused output projection kernel.
# ---------------------------------------------------------------------------
def _attn_kernel(*refs, hpb, dk, tq, s_len, has_mask, mask_per_head, causal,
                 return_attn, compute_dtype, approx_recip):
    """One grid step = one (batch b, query-tile qt, head-group g) slice."""
    idx = 0
    q_ref = refs[idx]; idx += 1          # (1, TQ, GD)   compute dtype
    k_ref = refs[idx]; idx += 1          # (1, S,  GD)
    v_ref = refs[idx]; idx += 1          # (1, S,  GD)
    wo_ref = refs[idx]; idx += 1         # (D, D)        W_o^T, VMEM-resident
    bo_ref = refs[idx]; idx += 1         # (1, D)        f32
    mask_ref = None
    if has_mask:
        mask_ref = refs[idx]; idx += 1   # (1, 1|HPB, TQ, S) bf16 additive bias
    out_ref = refs[idx]; idx += 1        # (1, TQ, D)
    attn_ref = None
    if return_attn:
        attn_ref = refs[idx]; idx += 1   # (1, HPB, TQ, S)
    acc_ref = refs[idx]                  # (TQ, D) f32 scratch

    cd = compute_dtype
    g = pl.program_id(2)
    gd = hpb * dk

    q_all = q_ref[0]                     # (TQ, GD)
    k_all = k_ref[0]                     # (S,  GD)
    v_all = v_ref[0]                     # (S,  GD)

    if causal:
        q0 = pl.program_id(1) * tq
        rows = jax.lax.broadcasted_iota(jnp.int32, (tq, s_len), 0) + q0
        cols = jax.lax.broadcasted_iota(jnp.int32, (tq, s_len), 1)
        keep = cols <= rows              # zero HBM traffic for causal masking

    if has_mask and not mask_per_head:
        shared_bias = mask_ref[0, 0].astype(jnp.float32)       # (TQ, S)

    ctxs = []
    for i in range(hpb):                 # static, short unrolled loop over heads
        lo, hi = i * dk, (i + 1) * dk
        qh = q_all[:, lo:hi]             # (TQ, dk)
        kh = k_all[:, lo:hi]             # (S,  dk)
        vh = v_all[:, lo:hi]             # (S,  dk)

        # Scores (TQ, S): contract dk directly — no K transpose materialized.
        s = jax.lax.dot_general(qh, kh, (((1,), (1,)), ((), ())),
                                preferred_element_type=jnp.float32)

        if has_mask:
            bias = (mask_ref[0, i].astype(jnp.float32)
                    if mask_per_head else shared_bias)
            s = s + bias                 # additive -1e9 bias == masked_fill
        if causal:
            s = jnp.where(keep, s, -1e9)

        # Row softmax stats in f32; divide -> EUP reciprocal.
        # (On v6e/v7x the exp could take bf16 operands for 2x EUP throughput.)
        m = jnp.max(s, axis=-1, keepdims=True)
        p = jnp.exp(s - m)
        l = jnp.sum(p, axis=-1, keepdims=True)
        inv_l = pl.reciprocal(l, approx=approx_recip)

        if return_attn:
            w = p * inv_l
            attn_ref[0, i] = w.astype(attn_ref.dtype)
            ctx = jnp.dot(w.astype(cd), vh, preferred_element_type=jnp.float32)
        else:
            # Normalize the (TQ, dk) context instead of the (TQ, S) weights.
            ctx = jnp.dot(p.astype(cd), vh,
                          preferred_element_type=jnp.float32) * inv_l
        ctxs.append(ctx)

    # Fused output projection for the whole head group:
    # out += concat_h(ctx_h) @ (W_o^T)[group rows]  ==  sum_h ctx_h @ Wo_h.
    ctx_g = ctxs[0] if hpb == 1 else jnp.concatenate(ctxs, axis=-1)  # (TQ, GD)

    start = pl.multiple_of(g * gd, gd)
    wo_g = wo_ref[pl.ds(start, gd), :]   # (GD, D) slab of the resident W_o^T

    @pl.when(g == 0)
    def _init():
        acc_ref[...] = jnp.zeros_like(acc_ref)

    acc_ref[...] += jnp.dot(ctx_g.astype(cd), wo_g,
                            preferred_element_type=jnp.float32)

    @pl.when(g == pl.num_programs(2) - 1)
    def _finalize():
        out_ref[0] = (acc_ref[...] + bo_ref[...]).astype(out_ref.dtype)


# ---------------------------------------------------------------------------
# Wrapper
# ---------------------------------------------------------------------------
def _compiler_params(dim_semantics, vmem_estimate_bytes):
    """Only raise the scoped-VMEM limit when the working set needs it."""
    kwargs = dict(dimension_semantics=dim_semantics)
    budget = int(vmem_estimate_bytes * 1.25)
    if budget > 32 * 1024 * 1024:
        # Derived from actual block sizes; capped well below v5e/v6e physical
        # 128 MiB.  On v7x (64 MiB) shrink q_tile / use bf16 instead.
        kwargs["vmem_limit_bytes"] = min(budget, 100 * 1024 * 1024)
    return pltpu.CompilerParams(**kwargs)


def multi_head_attention(query, key, value, params, num_heads, mask=None, *,
                         causal=False, q_tile=256, proj_tile=256,
                         heads_per_block=None,
                         compute_dtype=jnp.bfloat16, attn_dtype=jnp.bfloat16,
                         return_attn_weights=True, approx_recip=True):
    """query/key/value: (B, S, D) f32.  Returns (output, attention_weights|None).

    compute_dtype=jnp.float32 + approx_recip=False gives exact-parity mode.
    """
    B, S, D = query.shape
    H = num_heads
    assert D % H == 0, "d_model must be divisible by num_heads"
    dk = D // H

    TQ = min(q_tile, S)
    assert S % TQ == 0, "seq_len must be divisible by the query tile size"
    TP = min(proj_tile, S)
    assert S % TP == 0, "seq_len must be divisible by the projection tile size"

    # Heads per grid step so that HPB*dk fills the 128-lane vregs / MXU width.
    if heads_per_block is None:
        hpb = max(1, min(H, 128 // max(dk, 1)))
        while H % hpb:
            hpb -= 1
    else:
        hpb = heads_per_block
        assert H % hpb == 0
    gd = hpb * dk
    if gd % 128 != 0 and gd != D:        # keep lane-aligned blocks
        hpb, gd = H, D

    cd = compute_dtype
    cd_bytes = jnp.dtype(cd).itemsize
    wq, bq, wk, bk, wv, bv, wo, bo = params

    # ---- Host-side weight prep (free layout plumbing, done once). ---------
    wqT = jnp.asarray(wq).T.astype(cd)          # (D, D)  x @ W.T  ==  x @ wT
    wkT = jnp.asarray(wk).T.astype(cd)
    wvT = jnp.asarray(wv).T.astype(cd)
    woT = jnp.asarray(wo).T.astype(cd)
    bq2 = jnp.asarray(bq).reshape(1, D).astype(jnp.float32)
    bk2 = jnp.asarray(bk).reshape(1, D).astype(jnp.float32)
    bv2 = jnp.asarray(bv).reshape(1, D).astype(jnp.float32)
    bo2 = jnp.asarray(bo).reshape(1, D).astype(jnp.float32)

    scale = 1.0 / math.sqrt(dk)

    # ---- Stage 1: Q/K/V projections (computed once, weights resident). ----
    proj_vmem = (3 * TP * D * 4 * 2                 # x tiles (f32, 2 buffers)
                 + 3 * D * D * cd_bytes * 2          # resident weights
                 + 3 * D * 4 * 2                     # biases
                 + 3 * TP * D * cd_bytes * 2)        # projected outputs
    qp, kp, vp = pl.pallas_call(
        functools.partial(_qkv_proj_kernel, scale=scale),
        out_shape=(jax.ShapeDtypeStruct((B, S, D), cd),
                   jax.ShapeDtypeStruct((B, S, D), cd),
                   jax.ShapeDtypeStruct((B, S, D), cd)),
        grid_spec=pltpu.PrefetchScalarGridSpec(
            num_scalar_prefetch=0,
            grid=(B, S // TP),
            in_specs=[
                pl.BlockSpec((1, TP, D), lambda b, st: (b, st, 0)),   # q rows
                pl.BlockSpec((1, TP, D), lambda b, st: (b, st, 0)),   # k rows
                pl.BlockSpec((1, TP, D), lambda b, st: (b, st, 0)),   # v rows
                pl.BlockSpec((D, D), lambda b, st: (0, 0)),           # W_q^T
                pl.BlockSpec((D, D), lambda b, st: (0, 0)),           # W_k^T
                pl.BlockSpec((D, D), lambda b, st: (0, 0)),           # W_v^T
                pl.BlockSpec((1, D), lambda b, st: (0, 0)),           # b_q
                pl.BlockSpec((1, D), lambda b, st: (0, 0)),           # b_k
                pl.BlockSpec((1, D), lambda b, st: (0, 0)),           # b_v
            ],
            out_specs=[
                pl.BlockSpec((1, TP, D), lambda b, st: (b, st, 0)),
                pl.BlockSpec((1, TP, D), lambda b, st: (b, st, 0)),
                pl.BlockSpec((1, TP, D), lambda b, st: (b, st, 0)),
            ],
        ),
        compiler_params=_compiler_params(("parallel", "parallel"), proj_vmem),
    )(query, key, value, wqT, wkT, wvT, bq2, bk2, bv2)

    # ---- Mask -> bf16 additive bias (0 / -1e9), or in-kernel causal. ------
    has_mask = mask is not None
    mask_per_head = False
    mask_args, mask_specs = [], []
    if has_mask:
        m = jnp.asarray(mask)
        if m.ndim == 3:
            m = m[:, None]                           # (B, 1, S, S), like PyTorch
        assert m.ndim == 4 and m.shape[0] == B and m.shape[-2:] == (S, S)
        mask_per_head = (m.shape[1] == H)
        bias = jnp.where(m == 0, jnp.float32(-1e9),
                         jnp.float32(0.0)).astype(jnp.bfloat16)
        if mask_per_head:
            mask_specs = [pl.BlockSpec((1, hpb, TQ, S),
                                       lambda b, qt, g: (b, g, qt, 0))]
        else:
            mask_specs = [pl.BlockSpec((1, 1, TQ, S),
                                       lambda b, qt, g: (b, 0, qt, 0))]
        mask_args = [bias]

    # ---- Stage 2: attention + fused output projection. --------------------
    in_specs = [
        pl.BlockSpec((1, TQ, gd), lambda b, qt, g: (b, qt, g)),   # Q head-group
        pl.BlockSpec((1, S, gd),  lambda b, qt, g: (b, 0, g)),    # K head-group
        pl.BlockSpec((1, S, gd),  lambda b, qt, g: (b, 0, g)),    # V head-group
        pl.BlockSpec((D, D),      lambda b, qt, g: (0, 0)),       # W_o^T resident
        pl.BlockSpec((1, D),      lambda b, qt, g: (0, 0)),       # b_o
    ] + mask_specs

    out_spec_o = pl.BlockSpec((1, TQ, D), lambda b, qt, g: (b, qt, 0))
    if return_attn_weights:
        out_shape = (jax.ShapeDtypeStruct((B, S, D), query.dtype),
                     jax.ShapeDtypeStruct((B, H, S, S), attn_dtype))
        out_specs = [out_spec_o,
                     pl.BlockSpec((1, hpb, TQ, S),
                                  lambda b, qt, g: (b, g, qt, 0))]
    else:
        out_shape = jax.ShapeDtypeStruct((B, S, D), query.dtype)
        out_specs = out_spec_o

    attn_vmem = (TQ * gd * cd_bytes * 2
                 + 2 * S * gd * cd_bytes * 2
                 + D * D * cd_bytes * 2
                 + D * 4 * 2
                 + TQ * D * jnp.dtype(query.dtype).itemsize * 2
                 + TQ * D * 4)                                   # acc scratch
    if return_attn_weights:
        attn_vmem += hpb * TQ * S * jnp.dtype(attn_dtype).itemsize * 2
    if has_mask:
        attn_vmem += (hpb if mask_per_head else 1) * TQ * S * 2 * 2

    kernel = functools.partial(
        _attn_kernel, hpb=hpb, dk=dk, tq=TQ, s_len=S,
        has_mask=has_mask, mask_per_head=mask_per_head, causal=causal,
        return_attn=return_attn_weights, compute_dtype=cd,
        approx_recip=approx_recip)

    res = pl.pallas_call(
        kernel,
        out_shape=out_shape,
        grid_spec=pltpu.PrefetchScalarGridSpec(
            num_scalar_prefetch=0,
            grid=(B, S // TQ, H // hpb),
            in_specs=in_specs,
            out_specs=out_specs,
            scratch_shapes=[pltpu.VMEM((TQ, D), jnp.float32)],
        ),
        # (b, qt) are "parallel" for megacore / v7x 2-TC sharding; the head-
        # group axis carries the output-projection accumulator -> "arbitrary".
        compiler_params=_compiler_params(("parallel", "parallel", "arbitrary"),
                                         attn_vmem),
    )(qp, kp, vp, woT, bo2, *mask_args)

    if return_attn_weights:
        out, attn = res
        return out, attn
    return res, None


# ---------------------------------------------------------------------------
# Reference + test harness
# ---------------------------------------------------------------------------
def init_params(key, d_model):
    """Deterministic nn.Linear-style init: W ~ U(-1/sqrt(in), 1/sqrt(in))."""
    ks = jax.random.split(key, 8)
    bound = 1.0 / math.sqrt(d_model)

    def lin(kw, kb):
        w = jax.random.uniform(kw, (d_model, d_model), jnp.float32, -bound, bound)
        b = jax.random.uniform(kb, (d_model,), jnp.float32, -bound, bound)
        return w, b

    wq, bq = lin(ks[0], ks[1])
    wk, bk = lin(ks[2], ks[3])
    wv, bv = lin(ks[4], ks[5])
    wo, bo = lin(ks[6], ks[7])
    return (wq, bq, wk, bk, wv, bv, wo, bo)


def reference_mha(query, key, value, params, num_heads, mask=None):
    """Pure-JAX reference reproducing the PyTorch module semantics."""
    B, S, D = query.shape
    H = num_heads
    dk = D // H
    wq, bq, wk, bk, wv, bv, wo, bo = params
    hi = jax.lax.Precision.HIGHEST

    def proj(x, w, b):
        return jnp.einsum('bsd,ed->bse', x, w, precision=hi) + b

    Q = proj(query, wq, bq).reshape(B, S, H, dk).transpose(0, 2, 1, 3)
    K = proj(key, wk, bk).reshape(B, S, H, dk).transpose(0, 2, 1, 3)
    V = proj(value, wv, bv).reshape(B, S, H, dk).transpose(0, 2, 1, 3)

    scores = jnp.einsum('bhqd,bhkd->bhqk', Q, K,
                        precision=hi) / jnp.sqrt(jnp.float32(dk))
    if mask is not None:
        m4 = mask[:, None] if mask.ndim == 3 else mask
        scores = jnp.where(m4 == 0, -1e9, scores)
    attn = jax.nn.softmax(scores, axis=-1)
    ctx = jnp.einsum('bhqk,bhkd->bhqd', attn, V, precision=hi)
    ctx = ctx.transpose(0, 2, 1, 3).reshape(B, S, D)
    out = jnp.einsum('bsd,ed->bse', ctx, wo, precision=hi) + bo
    return out, attn


if __name__ == "__main__":
    # Small, lane-aligned shapes: D=256 (dk=64 -> 2 heads per grid step), S=128.
    d_model, num_heads, batch, seq = 256, 4, 2, 128

    root = jax.random.PRNGKey(0)
    k_params, k_q, k_k, k_v = jax.random.split(root, 4)
    params = init_params(k_params, d_model)
    query = jax.random.normal(k_q, (batch, seq, d_model), jnp.float32)
    key = jax.random.normal(k_k, (batch, seq, d_model), jnp.float32)
    value = jax.random.normal(k_v, (batch, seq, d_model), jnp.float32)

    ref_out, ref_attn = reference_mha(query, key, value, params, num_heads)

    # 1) Exact-parity mode: f32 MXU compute, exact reciprocal.
    out, attn = multi_head_attention(query, key, value, params, num_heads,
                                     compute_dtype=jnp.float32,
                                     attn_dtype=jnp.float32,
                                     approx_recip=False)
    jax.block_until_ready(out); jax.block_until_ready(attn)
    assert jnp.allclose(out, ref_out, atol=2e-3, rtol=2e-3), "f32 output mismatch"
    assert jnp.allclose(attn, ref_attn, atol=2e-3, rtol=2e-3), "f32 attn mismatch"

    # 2) Default fast mode: bf16 MXU operands, f32 accumulation, bf16 attn.
    out_b, attn_b = multi_head_attention(query, key, value, params, num_heads)
    jax.block_until_ready(out_b); jax.block_until_ready(attn_b)
    assert jnp.allclose(out_b, ref_out, atol=2e-2, rtol=2e-2), "bf16 output mismatch"
    assert jnp.allclose(attn_b.astype(jnp.float32), ref_attn,
                        atol=2e-2, rtol=2e-2), "bf16 attn mismatch"

    # 3) Explicit (causal) mask tensor, fast mode.
    causal_mask = jnp.broadcast_to(
        jnp.tril(jnp.ones((seq, seq), jnp.float32)), (batch, seq, seq))
    ref_out_m, ref_attn_m = reference_mha(query, key, value, params, num_heads,
                                          mask=causal_mask)
    out_m, attn_m = multi_head_attention(query, key, value, params, num_heads,
                                         mask=causal_mask)
    jax.block_until_ready(out_m); jax.block_until_ready(attn_m)
    assert jnp.allclose(out_m, ref_out_m, atol=2e-2, rtol=2e-2), "masked out mismatch"
    assert jnp.allclose(attn_m.astype(jnp.float32), ref_attn_m,
                        atol=2e-2, rtol=2e-2), "masked attn mismatch"

    # 4) In-kernel causal mask (zero mask HBM traffic), no attn-weights writeback.
    out_c, attn_c = multi_head_attention(query, key, value, params, num_heads,
                                         causal=True, return_attn_weights=False)
    jax.block_until_ready(out_c)
    assert attn_c is None
    assert jnp.allclose(out_c, ref_out_m, atol=2e-2, rtol=2e-2), "causal out mismatch"

    print("KERNEL_OK")
</pallas_src>

<mosaic_0001>
module attributes {stable_mosaic.version = 11 : i64} {
  func.func @_qkv_proj_kernel(%arg0: i32, %arg1: i32, %arg2: memref<1x128x256xf32, #tpu.memory_space<vmem>>, %arg3: memref<1x128x256xf32, #tpu.memory_space<vmem>>, %arg4: memref<1x128x256xf32, #tpu.memory_space<vmem>>, %arg5: memref<256x256xf32, #tpu.memory_space<vmem>>, %arg6: memref<256x256xf32, #tpu.memory_space<vmem>>, %arg7: memref<256x256xf32, #tpu.memory_space<vmem>>, %arg8: memref<1x256xf32, #tpu.memory_space<vmem>>, %arg9: memref<1x256xf32, #tpu.memory_space<vmem>>, %arg10: memref<1x256xf32, #tpu.memory_space<vmem>>, %arg11: memref<1x128x256xf32, #tpu.memory_space<vmem>>, %arg12: memref<1x128x256xf32, #tpu.memory_space<vmem>>, %arg13: memref<1x128x256xf32, #tpu.memory_space<vmem>>) attributes {dimension_semantics = [#tpu.dimension_semantics<parallel>, #tpu.dimension_semantics<parallel>], iteration_bounds = array<i64: 2, 1>, scalar_prefetch = 0 : i64, scratch_operands = 0 : i64, tpu.core_type = #tpu.core_type<tc>, window_params = [{transform_indices = @transform_0, window_bounds = array<i64: 1, 128, 256>}, {transform_indices = @transform_1, window_bounds = array<i64: 1, 128, 256>}, {transform_indices = @transform_2, window_bounds = array<i64: 1, 128, 256>}, {pipeline_mode = #tpu.pipeline_mode<synchronous>, transform_indices = @transform_3, window_bounds = array<i64: 256, 256>}, {pipeline_mode = #tpu.pipeline_mode<synchronous>, transform_indices = @transform_4, window_bounds = array<i64: 256, 256>}, {pipeline_mode = #tpu.pipeline_mode<synchronous>, transform_indices = @transform_5, window_bounds = array<i64: 256, 256>}, {pipeline_mode = #tpu.pipeline_mode<synchronous>, transform_indices = @transform_6, window_bounds = array<i64: 1, 256>}, {pipeline_mode = #tpu.pipeline_mode<synchronous>, transform_indices = @transform_7, window_bounds = array<i64: 1, 256>}, {pipeline_mode = #tpu.pipeline_mode<synchronous>, transform_indices = @transform_8, window_bounds = array<i64: 1, 256>}, {transform_indices = @transform_9, window_bounds = array<i64: 1, 128, 256>}, {transform_indices = @transform_10, window_bounds = array<i64: 1, 128, 256>}, {transform_indices = @transform_11, window_bounds = array<i64: 1, 128, 256>}]} {
    %c0 = arith.constant 0 : index
    %c0_0 = arith.constant 0 : index
    %c0_1 = arith.constant 0 : index
    %0 = vector.load %arg2[%c0, %c0_0, %c0_1] : memref<1x128x256xf32, #tpu.memory_space<vmem>>, vector<1x128x256xf32>
    %1 = vector.shape_cast %0 : vector<1x128x256xf32> to vector<128x256xf32>
    %c0_2 = arith.constant 0 : index
    %c0_3 = arith.constant 0 : index
    %2 = vector.load %arg5[%c0_2, %c0_3] : memref<256x256xf32, #tpu.memory_space<vmem>>, vector<256x256xf32>
    %cst = arith.constant dense<0.000000e+00> : vector<128x256xf32>
    %3 = tpu.matmul %1, %2, %cst {dimension_numbers = #tpu.dot_dimension_numbers<[1], [0], [0], [1], [0, 0, 1, 1], [], []>} : vector<128x256xf32>, vector<256x256xf32>, vector<128x256xf32> -> vector<128x256xf32>
    %c0_4 = arith.constant 0 : index
    %c0_5 = arith.constant 0 : index
    %4 = vector.load %arg8[%c0_4, %c0_5] : memref<1x256xf32, #tpu.memory_space<vmem>>, vector<1x256xf32>
    %5 = vector.broadcast %4 : vector<1x256xf32> to vector<128x256xf32>
    %6 = arith.addf %3, %5 : vector<128x256xf32>
    %cst_6 = arith.constant 1.250000e-01 : f32
    %7 = vector.broadcast %cst_6 : f32 to vector<128x256xf32>
    %8 = arith.mulf %6, %7 : vector<128x256xf32>
    %c0_7 = arith.constant 0 : index
    %c0_8 = arith.constant 0 : index
    %c0_9 = arith.constant 0 : index
    %9 = vector.load %arg11[%c0_7, %c0_8, %c0_9] : memref<1x128x256xf32, #tpu.memory_space<vmem>>, vector<1x128x256xf32>
    %10 = vector.shape_cast %9 : vector<1x128x256xf32> to vector<128x256xf32>
    %11 = vector.shape_cast %8 : vector<128x256xf32> to vector<1x128x256xf32>
    tpu.vector_store %arg11[%c0_7, %c0_8, %c0_9], %11 {strides = array<i32>} : memref<1x128x256xf32, #tpu.memory_space<vmem>>, vector<1x128x256xf32>,
    %c0_10 = arith.constant 0 : index
    %c0_11 = arith.constant 0 : index
    %c0_12 = arith.constant 0 : index
    %12 = vector.load %arg3[%c0_10, %c0_11, %c0_12] : memref<1x128x256xf32, #tpu.memory_space<vmem>>, vector<1x128x256xf32>
    %13 = vector.shape_cast %12 : vector<1x128x256xf32> to vector<128x256xf32>
    %c0_13 = arith.constant 0 : index
    %c0_14 = arith.constant 0 : index
    %14 = vector.load %arg6[%c0_13, %c0_14] : memref<256x256xf32, #tpu.memory_space<vmem>>, vector<256x256xf32>
    %cst_15 = arith.constant dense<0.000000e+00> : vector<128x256xf32>
    %15 = tpu.matmul %13, %14, %cst_15 {dimension_numbers = #tpu.dot_dimension_numbers<[1], [0], [0], [1], [0, 0, 1, 1], [], []>} : vector<128x256xf32>, vector<256x256xf32>, vector<128x256xf32> -> vector<128x256xf32>
    %c0_16 = arith.constant 0 : index
    %c0_17 = arith.constant 0 : index
    %16 = vector.load %arg9[%c0_16, %c0_17] : memref<1x256xf32, #tpu.memory_space<vmem>>, vector<1x256xf32>
    %17 = vector.broadcast %16 : vector<1x256xf32> to vector<128x256xf32>
    %18 = arith.addf %15, %17 : vector<128x256xf32>
    %c0_18 = arith.constant 0 : index
    %c0_19 = arith.constant 0 : index
    %c0_20 = arith.constant 0 : index
    %19 = vector.load %arg12[%c0_18, %c0_19, %c0_20] : memref<1x128x256xf32, #tpu.memory_space<vmem>>, vector<1x128x256xf32>
    %20 = vector.shape_cast %19 : vector<1x128x256xf32> to vector<128x256xf32>
    %21 = vector.shape_cast %18 : vector<128x256xf32> to vector<1x128x256xf32>
    tpu.vector_store %arg12[%c0_18, %c0_19, %c0_20], %21 {strides = array<i32>} : memref<1x128x256xf32, #tpu.memory_space<vmem>>, vector<1x128x256xf32>,
    %c0_21 = arith.constant 0 : index
    %c0_22 = arith.constant 0 : index
    %c0_23 = arith.constant 0 : index
    %22 = vector.load %arg4[%c0_21, %c0_22, %c0_23] : memref<1x128x256xf32, #tpu.memory_space<vmem>>, vector<1x128x256xf32>
    %23 = vector.shape_cast %22 : vector<1x128x256xf32> to vector<128x256xf32>
    %c0_24 = arith.constant 0 : index
    %c0_25 = arith.constant 0 : index
    %24 = vector.load %arg7[%c0_24, %c0_25] : memref<256x256xf32, #tpu.memory_space<vmem>>, vector<256x256xf32>
    %cst_26 = arith.constant dense<0.000000e+00> : vector<128x256xf32>
    %25 = tpu.matmul %23, %24, %cst_26 {dimension_numbers = #tpu.dot_dimension_numbers<[1], [0], [0], [1], [0, 0, 1, 1], [], []>} : vector<128x256xf32>, vector<256x256xf32>, vector<128x256xf32> -> vector<128x256xf32>
    %c0_27 = arith.constant 0 : index
    %c0_28 = arith.constant 0 : index
    %26 = vector.load %arg10[%c0_27, %c0_28] : memref<1x256xf32, #tpu.memory_space<vmem>>, vector<1x256xf32>
    %27 = vector.broadcast %26 : vector<1x256xf32> to vector<128x256xf32>
    %28 = arith.addf %25, %27 : vector<128x256xf32>
    %c0_29 = arith.constant 0 : index
    %c0_30 = arith.constant 0 : index
    %c0_31 = arith.constant 0 : index
    %29 = vector.load %arg13[%c0_29, %c0_30, %c0_31] : memref<1x128x256xf32, #tpu.memory_space<vmem>>, vector<1x128x256xf32>
    %30 = vector.shape_cast %29 : vector<1x128x256xf32> to vector<128x256xf32>
    %31 = vector.shape_cast %28 : vector<128x256xf32> to vector<1x128x256xf32>
    tpu.vector_store %arg13[%c0_29, %c0_30, %c0_31], %31 {strides = array<i32>} : memref<1x128x256xf32, #tpu.memory_space<vmem>>, vector<1x128x256xf32>,
    return
  }
  func.func @transform_0(%arg0: i32, %arg1: i32) -> (i32, i32, i32) {
    %c0_i32 = arith.constant 0 : i32
    %c0_i32_0 = arith.constant 0 : i32
    return %arg0, %arg1, %c0_i32 : i32, i32, i32
  }
  func.func @transform_1(%arg0: i32, %arg1: i32) -> (i32, i32, i32) {
    %c0_i32 = arith.constant 0 : i32
    %c0_i32_0 = arith.constant 0 : i32
    return %arg0, %arg1, %c0_i32 : i32, i32, i32
  }
  func.func @transform_2(%arg0: i32, %arg1: i32) -> (i32, i32, i32) {
    %c0_i32 = arith.constant 0 : i32
    %c0_i32_0 = arith.constant 0 : i32
    return %arg0, %arg1, %c0_i32 : i32, i32, i32
  }
  func.func @transform_3(%arg0: i32, %arg1: i32) -> (i32, i32) {
    %c0_i32 = arith.constant 0 : i32
    %c0_i32_0 = arith.constant 0 : i32
    %c0_i32_1 = arith.constant 0 : i32
    return %c0_i32, %c0_i32_0 : i32, i32
  }
  func.func @transform_4(%arg0: i32, %arg1: i32) -> (i32, i32) {
    %c0_i32 = arith.constant 0 : i32
    %c0_i32_0 = arith.constant 0 : i32
    %c0_i32_1 = arith.constant 0 : i32
    return %c0_i32, %c0_i32_0 : i32, i32
  }
  func.func @transform_5(%arg0: i32, %arg1: i32) -> (i32, i32) {
    %c0_i32 = arith.constant 0 : i32
    %c0_i32_0 = arith.constant 0 : i32
    %c0_i32_1 = arith.constant 0 : i32
    return %c0_i32, %c0_i32_0 : i32, i32
  }
  func.func @transform_6(%arg0: i32, %arg1: i32) -> (i32, i32) {
    %c0_i32 = arith.constant 0 : i32
    %c0_i32_0 = arith.constant 0 : i32
    %c0_i32_1 = arith.constant 0 : i32
    return %c0_i32, %c0_i32_0 : i32, i32
  }
  func.func @transform_7(%arg0: i32, %arg1: i32) -> (i32, i32) {
    %c0_i32 = arith.constant 0 : i32
    %c0_i32_0 = arith.constant 0 : i32
    %c0_i32_1 = arith.constant 0 : i32
    return %c0_i32, %c0_i32_0 : i32, i32
  }
  func.func @transform_8(%arg0: i32, %arg1: i32) -> (i32, i32) {
    %c0_i32 = arith.constant 0 : i32
    %c0_i32_0 = arith.constant 0 : i32
    %c0_i32_1 = arith.constant 0 : i32
    return %c0_i32, %c0_i32_0 : i32, i32
  }
  func.func @transform_9(%arg0: i32, %arg1: i32) -> (i32, i32, i32) {
    %c0_i32 = arith.constant 0 : i32
    %c0_i32_0 = arith.constant 0 : i32
    return %arg0, %arg1, %c0_i32 : i32, i32, i32
  }
  func.func @transform_10(%arg0: i32, %arg1: i32) -> (i32, i32, i32) {
    %c0_i32 = arith.constant 0 : i32
    %c0_i32_0 = arith.constant 0 : i32
    return %arg0, %arg1, %c0_i32 : i32, i32, i32
  }
  func.func @transform_11(%arg0: i32, %arg1: i32) -> (i32, i32, i32) {
    %c0_i32 = arith.constant 0 : i32
    %c0_i32_0 = arith.constant 0 : i32
    return %arg0, %arg1, %c0_i32 : i32, i32, i32
  }
}

</mosaic_0001>

<llo_original>
// kernel: tpu_custom_call.1
$region0: #{tpu_custom_call.1}
  #allocation0 [shape = 'u32[]', space=smem, size = 0x4, offset = 0x4, fixed_abs, tag = 'smem constant byte address 0x4 - core index']
  #allocation1 [shape = 'u32[144,128]{1,0:T(1,128)}', space=vmem, size = 0x12000, scoped, tag = 'internal scratch']
  %s0 = inlined_call_operand.hbm [shape: f32[2,128,256], index: 0, kind: input, shape index: {}]
  %s1 = inlined_call_operand.hbm [shape: f32[2,128,256], index: 1, kind: input, shape index: {}]
  %s2 = inlined_call_operand.hbm [shape: f32[2,128,256], index: 2, kind: input, shape index: {}]
  %s3 = inlined_call_operand.hbm [shape: f32[256,256], index: 3, kind: input, shape index: {}]
  %s4 = inlined_call_operand.hbm [shape: f32[256,256], index: 4, kind: input, shape index: {}]
  %s5 = inlined_call_operand.hbm [shape: f32[256,256], index: 5, kind: input, shape index: {}]
  %s6 = inlined_call_operand.vmem [shape: f32[1,256], index: 6, kind: input, shape index: {}]
  %s7 = inlined_call_operand.vmem [shape: f32[1,256], index: 7, kind: input, shape index: {}]
  %s8 = inlined_call_operand.vmem [shape: f32[1,256], index: 8, kind: input, shape index: {}]
  %s9 = inlined_call_operand.hbm [shape: f32[2,128,256], index: 9, kind: output, shape index: {0}]
  %s10 = inlined_call_operand.hbm [shape: f32[2,128,256], index: 10, kind: output, shape index: {1}]
  %s11 = inlined_call_operand.hbm [shape: f32[2,128,256], index: 11, kind: output, shape index: {2}]
  %12 = xla_tuple %s9, %s10, %s11
  %s13 = sld [smem:[#allocation0]]
  $region109: #{tpu_custom_call.1} parent=0
    _
  %s15 = ssub.s32 1, %s13
  %s16 = scalar_select 0, %s15, %s13
  $region1: #{tpu_custom_call.1} parent=0
    #allocation2 [shape = 'u8[262144]{0}', space=vmem, size = 0x40000, scoped, tag = 'input window, operand 0']
    #allocation3 [shape = 's32[2]{0}', space=sflag, size = 0x8, scoped, tag = 'scoped memory for tpu_custom_call.1']
    #allocation4 [shape = 's32[2]{0}', space=sflag, size = 0x8, scoped, tag = 'scoped memory for tpu_custom_call.1']
    #allocation5 [shape = 'u8[262144]{0}', space=vmem, size = 0x40000, scoped, tag = 'input window, operand 1']
    #allocation6 [shape = 's32[2]{0}', space=sflag, size = 0x8, scoped, tag = 'scoped memory for tpu_custom_call.1']
    #allocation7 [shape = 'u8[262144]{0}', space=vmem, size = 0x40000, scoped, tag = 'input window, operand 2']
    #allocation8 [shape = 'u8[262144]{0}', space=vmem, size = 0x40000, scoped, tag = 'input window, operand 3, single buffered']
    #allocation9 [shape = 's32[1]{0}', space=sflag, size = 0x4, scoped, tag = 'scoped memory for tpu_custom_call.1']
    #allocation10 [shape = 'u8[262144]{0}', space=vmem, size = 0x40000, scoped, tag = 'input window, operand 4, single buffered']
    #allocation11 [shape = 'u8[262144]{0}', space=vmem, size = 0x40000, scoped, tag = 'input window, operand 5, single buffered']
    #allocation12 [shape = 's32[1]{0}', space=sflag, size = 0x4, scoped, tag = 'scoped memory for tpu_custom_call.1']
    #allocation13 [shape = 'u8[262144]{0}', space=vmem, size = 0x40000, scoped, tag = 'output window, operand 0']
    #allocation14 [shape = 'u8[262144]{0}', space=vmem, size = 0x40000, scoped, tag = 'output window, operand 1']
    #allocation15 [shape = 's32[2]{0}', space=sflag, size = 0x8, scoped, tag = 'scoped memory for tpu_custom_call.1']
    #allocation16 [shape = 'u8[262144]{0}', space=vmem, size = 0x40000, scoped, tag = 'output window, operand 2']
    %17 = vsyncpa [#allocation3], 0
    %s18 = scalar_lea.sflag [#allocation3], 1
    %19 = vsyncpa %s18, 0
    %20 = vsyncpa [#allocation6], 0
    %s21 = scalar_lea.sflag [#allocation6], 1
    %22 = vsyncpa %s21, 0
    %23 = vsyncpa [#allocation9], 0
    %24 = vsyncpa [#allocation12], 0
    %25 = vsyncpa [#allocation4], 0
    %s26 = scalar_lea.sflag [#allocation4], 1
    %27 = vsyncpa %s26, 0
    %28 = vsyncpa [#allocation15], 0
    %s29 = scalar_lea.sflag [#allocation15], 1
    %30 = vsyncpa %s29, 0
    loop: start=0, step=1, limit=4
    $region2: #{tpu_custom_call.1} parent=1 // loop_pre_header
      _
    $region3: #{tpu_custom_call.1} parent=1 // loop_header
      %s32 = sphi 0, %s36
      %p33 = scmp.ge.s32.totalorder %s32, 4
      %s39 = sphi 0, %s51
      %s40 = sphi 0, %s47
      %s41 = sphi 0, %s39
      %s42 = sphi 0, %s40
      %s43 = sphi 0, %s41
      %s44 = sphi 0, %s42
      %s56 = sphi 0, %s58
      %s59 = sphi 0, %s56
      %s60 = sphi 0, %s59
      %s76 = sphi 0, %s60
      %s84 = sphi 0, %s86
      %s87 = sphi 0, %s84
      %s88 = sphi 0, %s87
      %s104 = sphi 0, %s88
      %s112 = sphi 0, %s114
      %s115 = sphi 0, %s112
      %s116 = sphi 0, %s115
      %s132 = sphi 0, %s116
      %s136 = sphi 0, %s136
      %s138 = sphi 0, %s136
      %s139 = sphi 0, %s138
      %s153 = sphi 0, %s139
      %s157 = sphi 0, %s157
      %s159 = sphi 0, %s157
      %s160 = sphi 0, %s159
      %s174 = sphi 0, %s160
      %s178 = sphi 0, %s178
      %s180 = sphi 0, %s178
      %s181 = sphi 0, %s180
      %s195 = sphi 0, %s181
      %s199 = sphi 0, %s199
      %s201 = sphi 0, %s199
      %s202 = sphi 0, %s201
      %s216 = sphi 0, %s202
      %s220 = sphi 0, %s220
      %s222 = sphi 0, %s220
      %s223 = sphi 0, %s222
      %s237 = sphi 0, %s223
      %s241 = sphi 0, %s241
      %s243 = sphi 0, %s241
      %s244 = sphi 0, %s243
      %s258 = sphi 0, %s244
      %s266 = sphi 0, %s268
      %s269 = sphi 0, %s266
      %s270 = sphi 0, %s269
      %s286 = sphi 0, %s270
      %s294 = sphi 0, %s296
      %s297 = sphi 0, %s294
      %s298 = sphi 0, %s297
      %s314 = sphi 0, %s298
      %s322 = sphi 0, %s324
      %s325 = sphi 0, %s322
      %s326 = sphi 0, %s325
      %s342 = sphi 0, %s326
    $region4: #{tpu_custom_call.1} parent=1 // loop_header_branch
      %35 = sbr.rel (%p33) target = $region8
    $region5: #{tpu_custom_call.1} parent=1 // loop_body
      %s37 = ssub.s32 %s32, 1
      %s38 = ssub.s32 %s32, 2
      %s45 = sadd.s32 1, %s40
      %p46 = scmp.ge.s32.totalorder %s45, 1
      %s47 = scalar_select %p46, 0, %s45
      %s48 = sadd.s32 1, %s39
      %s49 = scalar_select %p46, %s48, %s39
      %p50 = scmp.ge.s32.totalorder %s49, 2
      %s51 = scalar_select %p50, 0, %s49
      %s52 = ssub.s32 %s39, %s51
      %s53 = ssub.s32 %s40, %s47
      %s54 = sor.u32 %s52, %s53
      %p55 = scmp.eq.s32.totalorder %s54, 0
      %s57 = sadd.s32 %s56, 1
      %s58 = scalar_select %p55, %s56, %s57
      %p61 = pneg %p55
      %p62 = scmp.eq.s32.totalorder %s32, 1
      %p63 = por %p61, %p62
      %p64 = scmp.ne.s32.totalorder %s56, %s59
      %p65 = scmp.eq.s32.totalorder %s32, 0
      %p66 = por %p64, %p65
      %p67 = scmp.ne.s32.totalorder %s56, %s59
      %p68 = scmp.eq.s32.totalorder %s37, 1
      %p69 = por %p67, %p68
      %p70 = scmp.ne.s32.totalorder %s59, %s60
      %p71 = scmp.eq.s32.totalorder %s37, 0
      %p72 = por %p70, %p71
      %p73 = scmp.ne.s32.totalorder %s59, %s60
      %p74 = scmp.eq.s32.totalorder %s38, 1
      %p75 = por %p73, %p74
      %p77 = scmp.ne.s32.totalorder %s60, %s76
      %p78 = scmp.eq.s32.totalorder %s38, 0
      %p79 = por %p77, %p78
      %s80 = ssub.s32 %s39, %s51
      %s81 = ssub.s32 %s40, %s47
      %s82 = sor.u32 %s80, %s81
      %p83 = scmp.eq.s32.totalorder %s82, 0
      %s85 = sadd.s32 %s84, 1
      %s86 = scalar_select %p83, %s84, %s85
      %p89 = pneg %p83
      %p90 = scmp.eq.s32.totalorder %s32, 1
      %p91 = por %p89, %p90
      %p92 = scmp.ne.s32.totalorder %s84, %s87
      %p93 = scmp.eq.s32.totalorder %s32, 0
      %p94 = por %p92, %p93
      %p95 = scmp.ne.s32.totalorder %s84, %s87
      %p96 = scmp.eq.s32.totalorder %s37, 1
      %p97 = por %p95, %p96
      %p98 = scmp.ne.s32.totalorder %s87, %s88
      %p99 = scmp.eq.s32.totalorder %s37, 0
      %p100 = por %p98, %p99
      %p101 = scmp.ne.s32.totalorder %s87, %s88
      %p102 = scmp.eq.s32.totalorder %s38, 1
      %p103 = por %p101, %p102
      %p105 = scmp.ne.s32.totalorder %s88, %s104
      %p106 = scmp.eq.s32.totalorder %s38, 0
      %p107 = por %p105, %p106
      %s108 = ssub.s32 %s39, %s51
      %s109 = ssub.s32 %s40, %s47
      %s110 = sor.u32 %s108, %s109
      %p111 = scmp.eq.s32.totalorder %s110, 0
      %s113 = sadd.s32 %s112, 1
      %s114 = scalar_select %p111, %s112, %s113
      %p117 = pneg %p111
      %p118 = scmp.eq.s32.totalorder %s32, 1
      %p119 = por %p117, %p118
      %p120 = scmp.ne.s32.totalorder %s112, %s115
      %p121 = scmp.eq.s32.totalorder %s32, 0
      %p122 = por %p120, %p121
      %p123 = scmp.ne.s32.totalorder %s112, %s115
      %p124 = scmp.eq.s32.totalorder %s37, 1
      %p125 = por %p123, %p124
      %p126 = scmp.ne.s32.totalorder %s115, %s116
      %p127 = scmp.eq.s32.totalorder %s37, 0
      %p128 = por %p126, %p127
      %p129 = scmp.ne.s32.totalorder %s115, %s116
      %p130 = scmp.eq.s32.totalorder %s38, 1
      %p131 = por %p129, %p130
      %p133 = scmp.ne.s32.totalorder %s116, %s132
      %p134 = scmp.eq.s32.totalorder %s38, 0
      %p135 = por %p133, %p134
      %s137 = sadd.s32 %s136, 1
      %p140 = scmp.eq.s32.totalorder %s32, 1
      %p141 = scmp.ne.s32.totalorder %s136, %s138
      %p142 = scmp.eq.s32.totalorder %s32, 0
      %p143 = por %p141, %p142
      %p144 = scmp.ne.s32.totalorder %s136, %s138
      %p145 = scmp.eq.s32.totalorder %s37, 1
      %p146 = por %p144, %p145
      %p147 = scmp.ne.s32.totalorder %s138, %s139
      %p148 = scmp.eq.s32.totalorder %s37, 0
      %p149 = por %p147, %p148
      %p150 = scmp.ne.s32.totalorder %s138, %s139
      %p151 = scmp.eq.s32.totalorder %s38, 1
      %p152 = por %p150, %p151
      %p154 = scmp.ne.s32.totalorder %s139, %s153
      %p155 = scmp.eq.s32.totalorder %s38, 0
      %p156 = por %p154, %p155
      %s158 = sadd.s32 %s157, 1
      %p161 = scmp.eq.s32.totalorder %s32, 1
      %p162 = scmp.ne.s32.totalorder %s157, %s159
      %p163 = scmp.eq.s32.totalorder %s32, 0
      %p164 = por %p162, %p163
      %p165 = scmp.ne.s32.totalorder %s157, %s159
      %p166 = scmp.eq.s32.totalorder %s37, 1
      %p167 = por %p165, %p166
      %p168 = scmp.ne.s32.totalorder %s159, %s160
      %p169 = scmp.eq.s32.totalorder %s37, 0
      %p170 = por %p168, %p169
      %p171 = scmp.ne.s32.totalorder %s159, %s160
      %p172 = scmp.eq.s32.totalorder %s38, 1
      %p173 = por %p171, %p172
      %p175 = scmp.ne.s32.totalorder %s160, %s174
      %p176 = scmp.eq.s32.totalorder %s38, 0
      %p177 = por %p175, %p176
      %s179 = sadd.s32 %s178, 1
      %p182 = scmp.eq.s32.totalorder %s32, 1
      %p183 = scmp.ne.s32.totalorder %s178, %s180
      %p184 = scmp.eq.s32.totalorder %s32, 0
      %p185 = por %p183, %p184
      %p186 = scmp.ne.s32.totalorder %s178, %s180
      %p187 = scmp.eq.s32.totalorder %s37, 1
      %p188 = por %p186, %p187
      %p189 = scmp.ne.s32.totalorder %s180, %s181
      %p190 = scmp.eq.s32.totalorder %s37, 0
      %p191 = por %p189, %p190
      %p192 = scmp.ne.s32.totalorder %s180, %s181
      %p193 = scmp.eq.s32.totalorder %s38, 1
      %p194 = por %p192, %p193
      %p196 = scmp.ne.s32.totalorder %s181, %s195
      %p197 = scmp.eq.s32.totalorder %s38, 0
      %p198 = por %p196, %p197
      %s200 = sadd.s32 %s199, 1
      %p203 = scmp.eq.s32.totalorder %s32, 1
      %p204 = scmp.ne.s32.totalorder %s199, %s201
      %p205 = scmp.eq.s32.totalorder %s32, 0
      %p206 = por %p204, %p205
      %p207 = scmp.ne.s32.totalorder %s199, %s201
      %p208 = scmp.eq.s32.totalorder %s37, 1
      %p209 = por %p207, %p208
      %p210 = scmp.ne.s32.totalorder %s201, %s202
      %p211 = scmp.eq.s32.totalorder %s37, 0
      %p212 = por %p210, %p211
      %p213 = scmp.ne.s32.totalorder %s201, %s202
      %p214 = scmp.eq.s32.totalorder %s38, 1
      %p215 = por %p213, %p214
      %p217 = scmp.ne.s32.totalorder %s202, %s216
      %p218 = scmp.eq.s32.totalorder %s38, 0
      %p219 = por %p217, %p218
      %s221 = sadd.s32 %s220, 1
      %p224 = scmp.eq.s32.totalorder %s32, 1
      %p225 = scmp.ne.s32.totalorder %s220, %s222
      %p226 = scmp.eq.s32.totalorder %s32, 0
      %p227 = por %p225, %p226
      %p228 = scmp.ne.s32.totalorder %s220, %s222
      %p229 = scmp.eq.s32.totalorder %s37, 1
      %p230 = por %p228, %p229
      %p231 = scmp.ne.s32.totalorder %s222, %s223
      %p232 = scmp.eq.s32.totalorder %s37, 0
      %p233 = por %p231, %p232
      %p234 = scmp.ne.s32.totalorder %s222, %s223
      %p235 = scmp.eq.s32.totalorder %s38, 1
      %p236 = por %p234, %p235
      %p238 = scmp.ne.s32.totalorder %s223, %s237
      %p239 = scmp.eq.s32.totalorder %s38, 0
      %p240 = por %p238, %p239
      %s242 = sadd.s32 %s241, 1
      %p245 = scmp.eq.s32.totalorder %s32, 1
      %p246 = scmp.ne.s32.totalorder %s241, %s243
      %p247 = scmp.eq.s32.totalorder %s32, 0
      %p248 = por %p246, %p247
      %p249 = scmp.ne.s32.totalorder %s241, %s243
      %p250 = scmp.eq.s32.totalorder %s37, 1
      %p251 = por %p249, %p250
      %p252 = scmp.ne.s32.totalorder %s243, %s244
      %p253 = scmp.eq.s32.totalorder %s37, 0
      %p254 = por %p252, %p253
      %p255 = scmp.ne.s32.totalorder %s243, %s244
      %p256 = scmp.eq.s32.totalorder %s38, 1
      %p257 = por %p255, %p256
      %p259 = scmp.ne.s32.totalorder %s244, %s258
      %p260 = scmp.eq.s32.totalorder %s38, 0
      %p261 = por %p259, %p260
      %s262 = ssub.s32 %s39, %s51
      %s263 = ssub.s32 %s40, %s47
      %s264 = sor.u32 %s262, %s263
      %p265 = scmp.eq.s32.totalorder %s264, 0
      %s267 = sadd.s32 %s266, 1
      %s268 = scalar_select %p265, %s266, %s267
      %p271 = pneg %p265
      %p272 = scmp.eq.s32.totalorder %s32, 1
      %p273 = por %p271, %p272
      %p274 = scmp.ne.s32.totalorder %s266, %s269
      %p275 = scmp.eq.s32.totalorder %s32, 0
      %p276 = por %p274, %p275
      %p277 = scmp.ne.s32.totalorder %s266, %s269
      %p278 = scmp.eq.s32.totalorder %s37, 1
      %p279 = por %p277, %p278
      %p280 = scmp.ne.s32.totalorder %s269, %s270
      %p281 = scmp.eq.s32.totalorder %s37, 0
      %p282 = por %p280, %p281
      %p283 = scmp.ne.s32.totalorder %s269, %s270
      %p284 = scmp.eq.s32.totalorder %s38, 1
      %p285 = por %p283, %p284
      %p287 = scmp.ne.s32.totalorder %s270, %s286
      %p288 = scmp.eq.s32.totalorder %s38, 0
      %p289 = por %p287, %p288
      %s290 = ssub.s32 %s39, %s51
      %s291 = ssub.s32 %s40, %s47
      %s292 = sor.u32 %s290, %s291
      %p293 = scmp.eq.s32.totalorder %s292, 0
      %s295 = sadd.s32 %s294, 1
      %s296 = scalar_select %p293, %s294, %s295
      %p299 = pneg %p293
      %p300 = scmp.eq.s32.totalorder %s32, 1
      %p301 = por %p299, %p300
      %p302 = scmp.ne.s32.totalorder %s294, %s297
      %p303 = scmp.eq.s32.totalorder %s32, 0
      %p304 = por %p302, %p303
      %p305 = scmp.ne.s32.totalorder %s294, %s297
      %p306 = scmp.eq.s32.totalorder %s37, 1
      %p307 = por %p305, %p306
      %p308 = scmp.ne.s32.totalorder %s297, %s298
      %p309 = scmp.eq.s32.totalorder %s37, 0
      %p310 = por %p308, %p309
      %p311 = scmp.ne.s32.totalorder %s297, %s298
      %p312 = scmp.eq.s32.totalorder %s38, 1
      %p313 = por %p311, %p312
      %p315 = scmp.ne.s32.totalorder %s298, %s314
      %p316 = scmp.eq.s32.totalorder %s38, 0
      %p317 = por %p315, %p316
      %s318 = ssub.s32 %s39, %s51
      %s319 = ssub.s32 %s40, %s47
      %s320 = sor.u32 %s318, %s319
      %p321 = scmp.eq.s32.totalorder %s320, 0
      %s323 = sadd.s32 %s322, 1
      %s324 = scalar_select %p321, %s322, %s323
      %p327 = pneg %p321
      %p328 = scmp.eq.s32.totalorder %s32, 1
      %p329 = por %p327, %p328
      %p330 = scmp.ne.s32.totalorder %s322, %s325
      %p331 = scmp.eq.s32.totalorder %s32, 0
      %p332 = por %p330, %p331
      %p333 = scmp.ne.s32.totalorder %s322, %s325
      %p334 = scmp.eq.s32.totalorder %s37, 1
      %p335 = por %p333, %p334
      %p336 = scmp.ne.s32.totalorder %s325, %s326
      %p337 = scmp.eq.s32.totalorder %s37, 0
      %p338 = por %p336, %p337
      %p339 = scmp.ne.s32.totalorder %s325, %s326
      %p340 = scmp.eq.s32.totalorder %s38, 1
      %p341 = por %p339, %p340
      %p343 = scmp.ne.s32.totalorder %s326, %s342
      %p344 = scmp.eq.s32.totalorder %s38, 0
      %p345 = por %p343, %p344
      %p346 = scmp.le.s32.totalorder 1, %s32
      %p347 = scmp.lt.s32.totalorder %s32, 3
      %p348 = pnand %p346, %p347
      %p349 = pneg %p348
      // Predicated region
      $region9: #{tpu_custom_call.1} parent=5 // pred_check
        _
      $region10: #{tpu_custom_call.1} parent=5 // pred_check_branch
        %351 = sbr.rel (%p348) target = $region12
      $region11: #{tpu_custom_call.1} parent=5 // pred_region
        %s352 = ssub.s32 %s32, 1
        // Predicated region
        $region13: #{tpu_custom_call.1} parent=11 // pred_check
          %p353 = pneg %p149
        $region14: #{tpu_custom_call.1} parent=11 // pred_check_branch
          %355 = sbr.rel (%p353) target = $region16
        $region15: #{tpu_custom_call.1} parent=11 // pred_region
          %s357 = ssub.s32 8192, 8192
          %358 = vsyncadd [#allocation9], %s357
          %s359 = sshll.u32 [#allocation8], 4
          %s360 = int_to_ptr.vmem [resolvable:$true] %s359
          %365 = dma.hbm_to_vmem [thread:$0]  %s3, 8192, %s360, [#allocation9], 256, 256, 16
        $region16: #{tpu_custom_call.1} parent=11 // pred_fallthru
          _
        // Predicated region
        $region17: #{tpu_custom_call.1} parent=11 // pred_check
          %p366 = pneg %p170
        $region18: #{tpu_custom_call.1} parent=11 // pred_check_branch
          %368 = sbr.rel (%p366) target = $region20
        $region19: #{tpu_custom_call.1} parent=11 // pred_region
          %s370 = ssub.s32 8192, 8192
          %371 = vsyncadd [#allocation9], %s370
          %s372 = sshll.u32 [#allocation10], 4
          %s373 = int_to_ptr.vmem [resolvable:$true] %s372
          %378 = dma.hbm_to_vmem [thread:$0]  %s4, 8192, %s373, [#allocation9], 256, 256, 16
        $region20: #{tpu_custom_call.1} parent=11 // pred_fallthru
          _
        // Predicated region
        $region21: #{tpu_custom_call.1} parent=11 // pred_check
          %p379 = pneg %p191
        $region22: #{tpu_custom_call.1} parent=11 // pred_check_branch
          %381 = sbr.rel (%p379) target = $region24
        $region23: #{tpu_custom_call.1} parent=11 // pred_region
          %s383 = ssub.s32 8192, 8192
          %384 = vsyncadd [#allocation12], %s383
          %s385 = sshll.u32 [#allocation11], 4
          %s386 = int_to_ptr.vmem [resolvable:$true] %s385
          %391 = dma.hbm_to_vmem [thread:$0]  %s5, 8192, %s386, [#allocation12], 256, 256, 16
        $region24: #{tpu_custom_call.1} parent=11 // pred_fallthru
          _
        // Predicated region
        $region25: #{tpu_custom_call.1} parent=11 // pred_check
          %p392 = pneg %p212
        $region26: #{tpu_custom_call.1} parent=11 // pred_check_branch
          %394 = sbr.rel (%p392) target = $region28
        $region27: #{tpu_custom_call.1} parent=11 // pred_region
          _
        $region28: #{tpu_custom_call.1} parent=11 // pred_fallthru
          _
        // Predicated region
        $region29: #{tpu_custom_call.1} parent=11 // pred_check
          %p395 = pneg %p233
        $region30: #{tpu_custom_call.1} parent=11 // pred_check_branch
          %397 = sbr.rel (%p395) target = $region32
        $region31: #{tpu_custom_call.1} parent=11 // pred_region
          _
        $region32: #{tpu_custom_call.1} parent=11 // pred_fallthru
          _
        // Predicated region
        $region33: #{tpu_custom_call.1} parent=11 // pred_check
          %p398 = pneg %p254
        $region34: #{tpu_custom_call.1} parent=11 // pred_check_branch
          %400 = sbr.rel (%p398) target = $region36
        $region35: #{tpu_custom_call.1} parent=11 // pred_region
          _
        $region36: #{tpu_custom_call.1} parent=11 // pred_fallthru
          _
      $region12: #{tpu_custom_call.1} parent=5 // pred_fallthru
        _
      %p401 = scmp.lt.s32.totalorder %s32, 2
      // Predicated region
      $region37: #{tpu_custom_call.1} parent=5 // pred_check
        %p402 = pneg %p401
      $region38: #{tpu_custom_call.1} parent=5 // pred_check_branch
        %404 = sbr.rel (%p402) target = $region40
      $region39: #{tpu_custom_call.1} parent=5 // pred_region
        // Predicated region
        $region41: #{tpu_custom_call.1} parent=39 // pred_check
          %p405 = pneg %p66
        $region42: #{tpu_custom_call.1} parent=39 // pred_check_branch
          %407 = sbr.rel (%p405) target = $region44
        $region43: #{tpu_custom_call.1} parent=39 // pred_region
          %s408 = sand.u32 %s56, 1
          %s409 = scalar_lea.sflag [#allocation3], %s408
          %s410 = sand.u32 %s56, 1
          %s411 = smul.addr %s410, 256
          %s412 = scalar_lea.vmem [#allocation2], %s411
          %s413 = smul.u32 16, %s40
          %s415 = ssub.s32 4096, 4096
          %416 = vsyncadd %s409, %s415
          %s417 = smul.addr %s413, 2
          %s418 = smul.addr %s39, 32
          %s419 = sadd.s32 %s417, %s418
          %s420 = smul.addr %s419, 128
          %s421 = scalar_lea.hbm %s0, %s420
          %s422 = sshll.u32 %s412, 4
          %s423 = int_to_ptr.vmem [resolvable:$true] %s422
          %428 = dma.hbm_to_vmem [thread:$0]  %s421, 4096, %s423, %s409, 256, 256, 16
        $region44: #{tpu_custom_call.1} parent=39 // pred_fallthru
          _
        // Predicated region
        $region45: #{tpu_custom_call.1} parent=39 // pred_check
          %p429 = pneg %p94
        $region46: #{tpu_custom_call.1} parent=39 // pred_check_branch
          %431 = sbr.rel (%p429) target = $region48
        $region47: #{tpu_custom_call.1} parent=39 // pred_region
          %s432 = sand.u32 %s32, 1
          %s433 = scalar_lea.sflag [#allocation6], %s432
          %s434 = sand.u32 %s84, 1
          %s435 = smul.addr %s434, 256
          %s436 = scalar_lea.vmem [#allocation5], %s435
          %s437 = smul.u32 16, %s40
          %s439 = ssub.s32 4096, 4096
          %440 = vsyncadd %s433, %s439
          %s441 = smul.addr %s437, 2
          %s442 = smul.addr %s39, 32
          %s443 = sadd.s32 %s441, %s442
          %s444 = smul.addr %s443, 128
          %s445 = scalar_lea.hbm %s1, %s444
          %s446 = sshll.u32 %s436, 4
          %s447 = int_to_ptr.vmem [resolvable:$true] %s446
          %452 = dma.hbm_to_vmem [thread:$0]  %s445, 4096, %s447, %s433, 256, 256, 16
        $region48: #{tpu_custom_call.1} parent=39 // pred_fallthru
          _
        // Predicated region
        $region49: #{tpu_custom_call.1} parent=39 // pred_check
          %p453 = pneg %p122
        $region50: #{tpu_custom_call.1} parent=39 // pred_check_branch
          %455 = sbr.rel (%p453) target = $region52
        $region51: #{tpu_custom_call.1} parent=39 // pred_region
          %s456 = sand.u32 %s32, 1
          %s457 = scalar_lea.sflag [#allocation6], %s456
          %s458 = sand.u32 %s112, 1
          %s459 = smul.addr %s458, 256
          %s460 = scalar_lea.vmem [#allocation7], %s459
          %s461 = smul.u32 16, %s40
          %s463 = ssub.s32 4096, 4096
          %464 = vsyncadd %s457, %s463
          %s465 = smul.addr %s461, 2
          %s466 = smul.addr %s39, 32
          %s467 = sadd.s32 %s465, %s466
          %s468 = smul.addr %s467, 128
          %s469 = scalar_lea.hbm %s2, %s468
          %s470 = sshll.u32 %s460, 4
          %s471 = int_to_ptr.vmem [resolvable:$true] %s470
          %476 = dma.hbm_to_vmem [thread:$0]  %s469, 4096, %s471, %s457, 256, 256, 16
        $region52: #{tpu_custom_call.1} parent=39 // pred_fallthru
          _
      $region40: #{tpu_custom_call.1} parent=5 // pred_fallthru
        _
      %p477 = scmp.le.s32.totalorder 1, %s32
      %p478 = scmp.lt.s32.totalorder %s32, 3
      %p479 = pnand %p477, %p478
      %p480 = pneg %p479
      // Predicated region
      $region53: #{tpu_custom_call.1} parent=5 // pred_check
        _
      $region54: #{tpu_custom_call.1} parent=5 // pred_check_branch
        %482 = sbr.rel (%p479) target = $region56
      $region55: #{tpu_custom_call.1} parent=5 // pred_region
        %s483 = ssub.s32 %s32, 1
        %s484 = sand.u32 %s59, 1
        %s485 = scalar_lea.sflag [#allocation3], %s484
        %s486 = sand.u32 %s59, 1
        %s487 = smul.addr %s486, 256
        %s488 = scalar_lea.vmem [#allocation2], %s487
        // Predicated region
        $region57: #{tpu_custom_call.1} parent=55 // pred_check
          %p489 = pneg %p72
        $region58: #{tpu_custom_call.1} parent=55 // pred_check_branch
          %491 = sbr.rel (%p489) target = $region60
        $region59: #{tpu_custom_call.1} parent=55 // pred_region
          %492 = dma.done %s485, 4096
        $region60: #{tpu_custom_call.1} parent=55 // pred_fallthru
          _
        %s493 = sand.u32 %s37, 1
        %s494 = scalar_lea.sflag [#allocation6], %s493
        %s495 = sand.u32 %s87, 1
        %s496 = smul.addr %s495, 256
        %s497 = scalar_lea.vmem [#allocation5], %s496
        // Predicated region
        $region61: #{tpu_custom_call.1} parent=55 // pred_check
          %p498 = pneg %p100
        $region62: #{tpu_custom_call.1} parent=55 // pred_check_branch
          %500 = sbr.rel (%p498) target = $region64
        $region63: #{tpu_custom_call.1} parent=55 // pred_region
          %501 = dma.done %s494, 4096
        $region64: #{tpu_custom_call.1} parent=55 // pred_fallthru
          _
        %s502 = sand.u32 %s37, 1
        %s503 = scalar_lea.sflag [#allocation6], %s502
        %s504 = sand.u32 %s115, 1
        %s505 = smul.addr %s504, 256
        %s506 = scalar_lea.vmem [#allocation7], %s505
        // Predicated region
        $region65: #{tpu_custom_call.1} parent=55 // pred_check
          %p507 = pneg %p128
        $region66: #{tpu_custom_call.1} parent=55 // pred_check_branch
          %509 = sbr.rel (%p507) target = $region68
        $region67: #{tpu_custom_call.1} parent=55 // pred_region
          %510 = dma.done %s503, 4096
        $region68: #{tpu_custom_call.1} parent=55 // pred_fallthru
          _
        // Predicated region
        $region69: #{tpu_custom_call.1} parent=55 // pred_check
          %p511 = pneg %p149
        $region70: #{tpu_custom_call.1} parent=55 // pred_check_branch
          %513 = sbr.rel (%p511) target = $region72
        $region71: #{tpu_custom_call.1} parent=55 // pred_region
          %514 = dma.done [#allocation9], 8192
        $region72: #{tpu_custom_call.1} parent=55 // pred_fallthru
          _
        // Predicated region
        $region73: #{tpu_custom_call.1} parent=55 // pred_check
          %p515 = pneg %p170
        $region74: #{tpu_custom_call.1} parent=55 // pred_check_branch
          %517 = sbr.rel (%p515) target = $region76
        $region75: #{tpu_custom_call.1} parent=55 // pred_region
          %518 = dma.done [#allocation9], 8192
        $region76: #{tpu_custom_call.1} parent=55 // pred_fallthru
          _
        // Predicated region
        $region77: #{tpu_custom_call.1} parent=55 // pred_check
          %p519 = pneg %p191
        $region78: #{tpu_custom_call.1} parent=55 // pred_check_branch
          %521 = sbr.rel (%p519) target = $region80
        $region79: #{tpu_custom_call.1} parent=55 // pred_region
          %522 = dma.done [#allocation12], 8192
        $region80: #{tpu_custom_call.1} parent=55 // pred_fallthru
          _
        %s523 = sand.u32 %s59, 1
        %s524 = scalar_lea.sflag [#allocation3], %s523
        %s525 = sand.u32 %s59, 1
        %s526 = smul.addr %s525, 256
        %s527 = scalar_lea.vmem [#allocation2], %s526
        %p528 = pneg %p72
        %p529 = pneg %p69
        %s530 = sand.u32 %s37, 1
        %s531 = scalar_lea.sflag [#allocation6], %s530
        %s532 = sand.u32 %s87, 1
        %s533 = smul.addr %s532, 256
        %s534 = scalar_lea.vmem [#allocation5], %s533
        %p535 = pneg %p100
        %p536 = pneg %p97
        %s537 = sand.u32 %s37, 1
        %s538 = scalar_lea.sflag [#allocation6], %s537
        %s539 = sand.u32 %s115, 1
        %s540 = smul.addr %s539, 256
        %s541 = scalar_lea.vmem [#allocation7], %s540
        %p542 = pneg %p128
        %p543 = pneg %p125
        %p544 = pneg %p149
        %p545 = pneg %p146
        %p546 = pneg %p170
        %p547 = pneg %p167
        %p548 = pneg %p191
        %p549 = pneg %p188
        %p550 = pneg %p212
        %p551 = pneg %p209
        %p552 = pneg %p233
        %p553 = pneg %p230
        %p554 = pneg %p254
        %p555 = pneg %p251
        %p556 = pneg %p282
        %p557 = pneg %p279
        %s558 = sand.u32 %s269, 1
        %s559 = scalar_lea.sflag [#allocation4], %s558
        %s560 = sand.u32 %s269, 1
        %s561 = smul.addr %s560, 256
        %s562 = scalar_lea.vmem [#allocation13], %s561
        %p563 = pneg %p310
        %p564 = pneg %p307
        %s565 = sand.u32 %s37, 1
        %s566 = scalar_lea.sflag [#allocation15], %s565
        %s567 = sand.u32 %s297, 1
        %s568 = smul.addr %s567, 256
        %s569 = scalar_lea.vmem [#allocation14], %s568
        %p570 = pneg %p338
        %p571 = pneg %p335
        %s572 = sand.u32 %s37, 1
        %s573 = scalar_lea.sflag [#allocation15], %s572
        %s574 = sand.u32 %s325, 1
        %s575 = smul.addr %s574, 256
        %s576 = scalar_lea.vmem [#allocation16], %s575
        %s577 = smul.u32 16, %s42
        %s578 = smul.u32 16, %s42
        %s579 = smul.u32 16, %s42
        %s580 = smul.u32 16, %s42
        %s581 = smul.u32 16, %s42
        %s582 = smul.u32 16, %s42
        %v583 = vld [vmem:[%s488] sm:$0xff]
        %v584 = vld [vmem:[%s488 + $0x8] sm:$0xff]
        %v585 = vld [vmem:[%s488 + $0x10] sm:$0xff]
        %v586 = vld [vmem:[%s488 + $0x18] sm:$0xff]
        %v587 = vld [vmem:[%s488 + $0x20] sm:$0xff]
        %v588 = vld [vmem:[%s488 + $0x28] sm:$0xff]
        %v589 = vld [vmem:[%s488 + $0x30] sm:$0xff]
        %v590 = vld [vmem:[%s488 + $0x38] sm:$0xff]
        %v591 = vld [vmem:[%s488 + $0x40] sm:$0xff]
        %v592 = vld [vmem:[%s488 + $0x48] sm:$0xff]
        %v593 = vld [vmem:[%s488 + $0x50] sm:$0xff]
        %v594 = vld [vmem:[%s488 + $0x58] sm:$0xff]
        %v595 = vld [vmem:[%s488 + $0x60] sm:$0xff]
        %v596 = vld [vmem:[%s488 + $0x68] sm:$0xff]
        %v597 = vld [vmem:[%s488 + $0x70] sm:$0xff]
        %v598 = vld [vmem:[%s488 + $0x78] sm:$0xff]
        %v599 = vld [vmem:[%s488 + $0x80] sm:$0xff]
        %v600 = vld [vmem:[%s488 + $0x88] sm:$0xff]
        %v601 = vld [vmem:[%s488 + $0x90] sm:$0xff]
        %v602 = vld [vmem:[%s488 + $0x98] sm:$0xff]
        %v603 = vld [vmem:[%s488 + $0xa0] sm:$0xff]
        %v604 = vld [vmem:[%s488 + $0xa8] sm:$0xff]
        %v605 = vld [vmem:[%s488 + $0xb0] sm:$0xff]
        %v606 = vld [vmem:[%s488 + $0xb8] sm:$0xff]
        %v607 = vld [vmem:[%s488 + $0xc0] sm:$0xff]
        %v608 = vld [vmem:[%s488 + $0xc8] sm:$0xff]
        %v609 = vld [vmem:[%s488 + $0xd0] sm:$0xff]
        %v610 = vld [vmem:[%s488 + $0xd8] sm:$0xff]
        %v611 = vld [vmem:[%s488 + $0xe0] sm:$0xff]
        %v612 = vld [vmem:[%s488 + $0xe8] sm:$0xff]
        %v613 = vld [vmem:[%s488 + $0xf0] sm:$0xff]
        %v614 = vld [vmem:[%s488 + $0xf8] sm:$0xff]
        %v615 = vld [vmem:[#allocation8] sm:$0xff]
        %v616 = vld [vmem:[#allocation8 + $0x8] sm:$0xff]
        %v617 = vld [vmem:[#allocation8 + $0x10] sm:$0xff]
        %v618 = vld [vmem:[#allocation8 + $0x18] sm:$0xff]
        %v619 = vld [vmem:[#allocation8 + $0x20] sm:$0xff]
        %v620 = vld [vmem:[#allocation8 + $0x28] sm:$0xff]
        %v621 = vld [vmem:[#allocation8 + $0x30] sm:$0xff]
        %v622 = vld [vmem:[#allocation8 + $0x38] sm:$0xff]
        %v623 = vld [vmem:[#allocation8 + $0x40] sm:$0xff]
        %v624 = vld [vmem:[#allocation8 + $0x48] sm:$0xff]
        %v625 = vld [vmem:[#allocation8 + $0x50] sm:$0xff]
        %v626 = vld [vmem:[#allocation8 + $0x58] sm:$0xff]
        %v627 = vld [vmem:[#allocation8 + $0x60] sm:$0xff]
        %v628 = vld [vmem:[#allocation8 + $0x68] sm:$0xff]
        %v629 = vld [vmem:[#allocation8 + $0x70] sm:$0xff]
        %v630 = vld [vmem:[#allocation8 + $0x78] sm:$0xff]
        %v631 = vld [vmem:[#allocation8 + $0x80] sm:$0xff]
        %v632 = vld [vmem:[#allocation8 + $0x88] sm:$0xff]
        %v633 = vld [vmem:[#allocation8 + $0x90] sm:$0xff]
        %v634 = vld [vmem:[#allocation8 + $0x98] sm:$0xff]
        %v635 = vld [vmem:[#allocation8 + $0xa0] sm:$0xff]
        %v636 = vld [vmem:[#allocation8 + $0xa8] sm:$0xff]
        %v637 = vld [vmem:[#allocation8 + $0xb0] sm:$0xff]
        %v638 = vld [vmem:[#allocation8 + $0xb8] sm:$0xff]
        %v639 = vld [vmem:[#allocation8 + $0xc0] sm:$0xff]
        %v640 = vld [vmem:[#allocation8 + $0xc8] sm:$0xff]
        %v641 = vld [vmem:[#allocation8 + $0xd0] sm:$0xff]
        %v642 = vld [vmem:[#allocation8 + $0xd8] sm:$0xff]
        %v643 = vld [vmem:[#allocation8 + $0xe0] sm:$0xff]
        %v644 = vld [vmem:[#allocation8 + $0xe8] sm:$0xff]
        %v645 = vld [vmem:[#allocation8 + $0xf0] sm:$0xff]
        %v646 = vld [vmem:[#allocation8 + $0xf8] sm:$0xff]
        %v647 = vld [vmem:[#allocation8 + $0x100] sm:$0xff]
        %v648 = vld [vmem:[#allocation8 + $0x108] sm:$0xff]
        %v649 = vld [vmem:[#allocation8 + $0x110] sm:$0xff]
        %v650 = vld [vmem:[#allocation8 + $0x118] sm:$0xff]
        %v651 = vld [vmem:[#allocation8 + $0x120] sm:$0xff]
        %v652 = vld [vmem:[#allocation8 + $0x128] sm:$0xff]
        %v653 = vld [vmem:[#allocation8 + $0x130] sm:$0xff]
        %v654 = vld [vmem:[#allocation8 + $0x138] sm:$0xff]
        %v655 = vld [vmem:[#allocation8 + $0x140] sm:$0xff]
        %v656 = vld [vmem:[#allocation8 + $0x148] sm:$0xff]
        %v657 = vld [vmem:[#allocation8 + $0x150] sm:$0xff]
        %v658 = vld [vmem:[#allocation8 + $0x158] sm:$0xff]
        %v659 = vld [vmem:[#allocation8 + $0x160] sm:$0xff]
        %v660 = vld [vmem:[#allocation8 + $0x168] sm:$0xff]
        %v661 = vld [vmem:[#allocation8 + $0x170] sm:$0xff]
        %v662 = vld [vmem:[#allocation8 + $0x178] sm:$0xff]
        %v663 = vld [vmem:[#allocation8 + $0x180] sm:$0xff]
        %v664 = vld [vmem:[#allocation8 + $0x188] sm:$0xff]
        %v665 = vld [vmem:[#allocation8 + $0x190] sm:$0xff]
        %v666 = vld [vmem:[#allocation8 + $0x198] sm:$0xff]
        %v667 = vld [vmem:[#allocation8 + $0x1a0] sm:$0xff]
        %v668 = vld [vmem:[#allocation8 + $0x1a8] sm:$0xff]
        %v669 = vld [vmem:[#allocation8 + $0x1b0] sm:$0xff]
        %v670 = vld [vmem:[#allocation8 + $0x1b8] sm:$0xff]
        %v671 = vld [vmem:[#allocation8 + $0x1c0] sm:$0xff]
        %v672 = vld [vmem:[#allocation8 + $0x1c8] sm:$0xff]
        %v673 = vld [vmem:[#allocation8 + $0x1d0] sm:$0xff]
        %v674 = vld [vmem:[#allocation8 + $0x1d8] sm:$0xff]
        %v675 = vld [vmem:[#allocation8 + $0x1e0] sm:$0xff]
        %v676 = vld [vmem:[#allocation8 + $0x1e8] sm:$0xff]
        %v677 = vld [vmem:[#allocation8 + $0x1f0] sm:$0xff]
        %v678 = vld [vmem:[#allocation8 + $0x1f8] sm:$0xff]
        %v679 = vld [vmem:[%s6] sm:$0x3]
        %v681 = vlaneseq
        %v682 = vshrl.u32 %v681, 7
        %v683 = vsub.s32 0, %v682
        %v684 = vrot.slane %v679, %v683
        %v685 = vlaneseq
        %v686 = vshrl.u32 %v685, 7
        %v687 = vsub.s32 1, %v686
        %v688 = vrot.slane %v679, %v687
        %691 = vmatprep.subr.mxu0 %v646
        %692 = vmatpush1.msra.mxu0 %v645
        %693 = vmatprep.subr.mxu0 %v644
        %694 = vmatpush1.msra.mxu0 %v643
        %695 = vmatprep.subr.mxu0 %v642
        %696 = vmatpush1.msra.mxu0 %v641
        %697 = vmatprep.subr.mxu0 %v640
        %698 = vmatpush1.msra.mxu0 %v639
        %699 = vmatprep.subr.mxu0 %v638
        %700 = vmatpush1.msra.mxu0 %v637
        %701 = vmatprep.subr.mxu0 %v636
        %702 = vmatpush1.msra.mxu0 %v635
        %703 = vmatprep.subr.mxu0 %v634
        %704 = vmatpush1.msra.mxu0 %v633
        %705 = vmatprep.subr.mxu0 %v632
        %706 = vmatpush1.msra.mxu0 %v631
        %707 = vmatprep.subr.mxu0 %v630
        %708 = vmatpush1.msra.mxu0 %v629
        %709 = vmatprep.subr.mxu0 %v628
        %710 = vmatpush1.msra.mxu0 %v627
        %711 = vmatprep.subr.mxu0 %v626
        %712 = vmatpush1.msra.mxu0 %v625
        %713 = vmatprep.subr.mxu0 %v624
        %714 = vmatpush1.msra.mxu0 %v623
        %715 = vmatprep.subr.mxu0 %v622
        %716 = vmatpush1.msra.mxu0 %v621
        %717 = vmatprep.subr.mxu0 %v620
        %718 = vmatpush1.msra.mxu0 %v619
        %719 = vmatprep.subr.mxu0 %v618
        %720 = vmatpush1.msra.mxu0 %v617
        %721 = vmatprep.subr.mxu0 %v616
        %722 = vmatpush1.msra.mxu0 %v615
        %723 = vmatprep.subr.mxu0 %v678
        %724 = vmatpush2.msra.mxu0 %v677
        %725 = vmatprep.subr.mxu0 %v676
        %726 = vmatpush2.msra.mxu0 %v675
        %727 = vmatprep.subr.mxu0 %v674
        %728 = vmatpush2.msra.mxu0 %v673
        %729 = vmatprep.subr.mxu0 %v672
        %730 = vmatpush2.msra.mxu0 %v671
        %731 = vmatprep.subr.mxu0 %v670
        %732 = vmatpush2.msra.mxu0 %v669
        %733 = vmatprep.subr.mxu0 %v668
        %734 = vmatpush2.msra.mxu0 %v667
        %735 = vmatprep.subr.mxu0 %v666
        %736 = vmatpush2.msra.mxu0 %v665
        %737 = vmatprep.subr.mxu0 %v664
        %738 = vmatpush2.msra.mxu0 %v663
        %739 = vmatprep.subr.mxu0 %v662
        %740 = vmatpush2.msra.mxu0 %v661
        %741 = vmatprep.subr.mxu0 %v660
        %742 = vmatpush2.msra.mxu0 %v659
        %743 = vmatprep.subr.mxu0 %v658
        %744 = vmatpush2.msra.mxu0 %v657
        %745 = vmatprep.subr.mxu0 %v656
        %746 = vmatpush2.msra.mxu0 %v655
        %747 = vmatprep.subr.mxu0 %v654
        %748 = vmatpush2.msra.mxu0 %v653
        %749 = vmatprep.subr.mxu0 %v652
        %750 = vmatpush2.msra.mxu0 %v651
        %751 = vmatprep.subr.mxu0 %v650
        %752 = vmatpush2.msra.mxu0 %v649
        %753 = vmatprep.subr.mxu0 %v648
        %754 = vmatpush2.msra.mxu0 %v647
        %755 = vmatprep.mubr.f32.mxu0 %v584
        %756 = vmatmul.mubr.f32.gmra.mxu0 %v583
        %v757 = vpop.f32.mrf.mxu0
        %v758 = vadd.f32 %v684, %v757
        %v759 = vpop.f32.mrf.mxu0
        %v760 = vadd.f32 %v688, %v759
        %761 = vmatprep.mubr.f32.mxu0 %v586
        %762 = vmatmul.mubr.f32.gmra.mxu0 %v585
        %v763 = vpop.f32.mrf.mxu0
        %v764 = vadd.f32 %v684, %v763
        %v765 = vpop.f32.mrf.mxu0
        %v766 = vadd.f32 %v688, %v765
        %767 = vmatprep.mubr.f32.mxu0 %v588
        %768 = vmatmul.mubr.f32.gmra.mxu0 %v587
        %v769 = vpop.f32.mrf.mxu0
        %v770 = vadd.f32 %v684, %v769
        %v771 = vpop.f32.mrf.mxu0
        %v772 = vadd.f32 %v688, %v771
        %773 = vmatprep.mubr.f32.mxu0 %v590
        %774 = vmatmul.mubr.f32.gmra.mxu0 %v589
        %v775 = vpop.f32.mrf.mxu0
        %v776 = vadd.f32 %v684, %v775
        %v777 = vpop.f32.mrf.mxu0
        %v778 = vadd.f32 %v688, %v777
        %779 = vmatprep.mubr.f32.mxu0 %v592
        %780 = vmatmul.mubr.f32.gmra.mxu0 %v591
        %v781 = vpop.f32.mrf.mxu0
        %v782 = vadd.f32 %v684, %v781
        %v783 = vpop.f32.mrf.mxu0
        %v784 = vadd.f32 %v688, %v783
        %785 = vmatprep.mubr.f32.mxu0 %v594
        %786 = vmatmul.mubr.f32.gmra.mxu0 %v593
        %v787 = vpop.f32.mrf.mxu0
        %v788 = vadd.f32 %v684, %v787
        %v789 = vpop.f32.mrf.mxu0
        %v790 = vadd.f32 %v688, %v789
        %791 = vmatprep.mubr.f32.mxu0 %v596
        %792 = vmatmul.mubr.f32.gmra.mxu0 %v595
        %v793 = vpop.f32.mrf.mxu0
        %v794 = vadd.f32 %v684, %v793
        %v795 = vpop.f32.mrf.mxu0
        %v796 = vadd.f32 %v688, %v795
        %797 = vmatprep.mubr.f32.mxu0 %v598
        %798 = vmatmul.mubr.f32.gmra.mxu0 %v597
        %v799 = vpop.f32.mrf.mxu0
        %v800 = vadd.f32 %v684, %v799
        %v801 = vpop.f32.mrf.mxu0
        %v802 = vadd.f32 %v688, %v801
        %803 = vmatprep.mubr.f32.mxu0 %v600
        %804 = vmatmul.mubr.f32.gmra.mxu0 %v599
        %v805 = vpop.f32.mrf.mxu0
        %v806 = vadd.f32 %v684, %v805
        %v807 = vpop.f32.mrf.mxu0
        %v808 = vadd.f32 %v688, %v807
        %809 = vmatprep.mubr.f32.mxu0 %v602
        %810 = vmatmul.mubr.f32.gmra.mxu0 %v601
        %v811 = vpop.f32.mrf.mxu0
        %v812 = vadd.f32 %v684, %v811
        %v813 = vpop.f32.mrf.mxu0
        %v814 = vadd.f32 %v688, %v813
        %815 = vmatprep.mubr.f32.mxu0 %v604
        %816 = vmatmul.mubr.f32.gmra.mxu0 %v603
        %v817 = vpop.f32.mrf.mxu0
        %v818 = vadd.f32 %v684, %v817
        %v819 = vpop.f32.mrf.mxu0
        %v820 = vadd.f32 %v688, %v819
        %821 = vmatprep.mubr.f32.mxu0 %v606
        %822 = vmatmul.mubr.f32.gmra.mxu0 %v605
        %v823 = vpop.f32.mrf.mxu0
        %v824 = vadd.f32 %v684, %v823
        %v825 = vpop.f32.mrf.mxu0
        %v826 = vadd.f32 %v688, %v825
        %827 = vmatprep.mubr.f32.mxu0 %v608
        %828 = vmatmul.mubr.f32.gmra.mxu0 %v607
        %v829 = vpop.f32.mrf.mxu0
        %v830 = vadd.f32 %v684, %v829
        %v831 = vpop.f32.mrf.mxu0
        %v832 = vadd.f32 %v688, %v831
        %833 = vmatprep.mubr.f32.mxu0 %v610
        %834 = vmatmul.mubr.f32.gmra.mxu0 %v609
        %v835 = vpop.f32.mrf.mxu0
        %v836 = vadd.f32 %v684, %v835
        %v837 = vpop.f32.mrf.mxu0
        %v838 = vadd.f32 %v688, %v837
        %839 = vmatprep.mubr.f32.mxu0 %v612
        %840 = vmatmul.mubr.f32.gmra.mxu0 %v611
        %v841 = vpop.f32.mrf.mxu0
        %v842 = vadd.f32 %v684, %v841
        %v843 = vpop.f32.mrf.mxu0
        %v844 = vadd.f32 %v688, %v843
        %845 = vmatprep.mubr.f32.mxu0 %v614
        %846 = vmatmul.mubr.f32.gmra.mxu0 %v613
        %v847 = vpop.f32.mrf.mxu0
        %v848 = vadd.f32 %v684, %v847
        %v849 = vpop.f32.mrf.mxu0
        %v850 = vadd.f32 %v688, %v849
        %851 = vdwg.mxu0
        %v852 = vmul.f32 %v758, 0.125
        %v853 = vmul.f32 %v760, 0.125
        %v854 = vmul.f32 %v764, 0.125
        %v855 = vmul.f32 %v766, 0.125
        %v856 = vmul.f32 %v770, 0.125
        %v857 = vmul.f32 %v772, 0.125
        %v858 = vmul.f32 %v776, 0.125
        %v859 = vmul.f32 %v778, 0.125
        %v860 = vmul.f32 %v782, 0.125
        %v861 = vmul.f32 %v784, 0.125
        %v862 = vmul.f32 %v788, 0.125
        %v863 = vmul.f32 %v790, 0.125
        %v864 = vmul.f32 %v794, 0.125
        %v865 = vmul.f32 %v796, 0.125
        %v866 = vmul.f32 %v800, 0.125
        %v867 = vmul.f32 %v802, 0.125
        %v868 = vmul.f32 %v806, 0.125
        %v869 = vmul.f32 %v808, 0.125
        %v870 = vmul.f32 %v812, 0.125
        %v871 = vmul.f32 %v814, 0.125
        %v872 = vmul.f32 %v818, 0.125
        %v873 = vmul.f32 %v820, 0.125
        %v874 = vmul.f32 %v824, 0.125
        %v875 = vmul.f32 %v826, 0.125
        %v876 = vmul.f32 %v830, 0.125
        %v877 = vmul.f32 %v832, 0.125
        %v878 = vmul.f32 %v836, 0.125
        %v879 = vmul.f32 %v838, 0.125
        %v880 = vmul.f32 %v842, 0.125
        %v881 = vmul.f32 %v844, 0.125
        %v882 = vmul.f32 %v848, 0.125
        %v883 = vmul.f32 %v850, 0.125
        %884 = vst [vmem:[%s562] sm:$0xff] %v852
        %885 = vst [vmem:[%s562 + $0x8] sm:$0xff] %v853
        %886 = vst [vmem:[%s562 + $0x10] sm:$0xff] %v854
        %887 = vst [vmem:[%s562 + $0x18] sm:$0xff] %v855
        %888 = vst [vmem:[%s562 + $0x20] sm:$0xff] %v856
        %889 = vst [vmem:[%s562 + $0x28] sm:$0xff] %v857
        %890 = vst [vmem:[%s562 + $0x30] sm:$0xff] %v858
        %891 = vst [vmem:[%s562 + $0x38] sm:$0xff] %v859
        %892 = vst [vmem:[%s562 + $0x40] sm:$0xff] %v860
        %893 = vst [vmem:[%s562 + $0x48] sm:$0xff] %v861
        %894 = vst [vmem:[%s562 + $0x50] sm:$0xff] %v862
        %895 = vst [vmem:[%s562 + $0x58] sm:$0xff] %v863
        %896 = vst [vmem:[%s562 + $0x60] sm:$0xff] %v864
        %897 = vst [vmem:[%s562 + $0x68] sm:$0xff] %v865
        %898 = vst [vmem:[%s562 + $0x70] sm:$0xff] %v866
        %899 = vst [vmem:[%s562 + $0x78] sm:$0xff] %v867
        %900 = vst [vmem:[%s562 + $0x80] sm:$0xff] %v868
        %901 = vst [vmem:[%s562 + $0x88] sm:$0xff] %v869
        %902 = vst [vmem:[%s562 + $0x90] sm:$0xff] %v870
        %903 = vst [vmem:[%s562 + $0x98] sm:$0xff] %v871
        %904 = vst [vmem:[%s562 + $0xa0] sm:$0xff] %v872
        %905 = vst [vmem:[%s562 + $0xa8] sm:$0xff] %v873
        %906 = vst [vmem:[%s562 + $0xb0] sm:$0xff] %v874
        %907 = vst [vmem:[%s562 + $0xb8] sm:$0xff] %v875
        %908 = vst [vmem:[%s562 + $0xc0] sm:$0xff] %v876
        %909 = vst [vmem:[%s562 + $0xc8] sm:$0xff] %v877
        %910 = vst [vmem:[%s562 + $0xd0] sm:$0xff] %v878
        %911 = vst [vmem:[%s562 + $0xd8] sm:$0xff] %v879
        %912 = vst [vmem:[%s562 + $0xe0] sm:$0xff] %v880
        %913 = vst [vmem:[%s562 + $0xe8] sm:$0xff] %v881
        %914 = vst [vmem:[%s562 + $0xf0] sm:$0xff] %v882
        %915 = vst [vmem:[%s562 + $0xf8] sm:$0xff] %v883
        %v916 = vld [vmem:[%s497] sm:$0xff]
        %v917 = vld [vmem:[%s497 + $0x8] sm:$0xff]
        %v918 = vld [vmem:[%s497 + $0x10] sm:$0xff]
        %v919 = vld [vmem:[%s497 + $0x18] sm:$0xff]
        %v920 = vld [vmem:[%s497 + $0x20] sm:$0xff]
        %v921 = vld [vmem:[%s497 + $0x28] sm:$0xff]
        %v922 = vld [vmem:[%s497 + $0x30] sm:$0xff]
        %v923 = vld [vmem:[%s497 + $0x38] sm:$0xff]
        %v924 = vld [vmem:[%s497 + $0x40] sm:$0xff]
        %v925 = vld [vmem:[%s497 + $0x48] sm:$0xff]
        %v926 = vld [vmem:[%s497 + $0x50] sm:$0xff]
        %v927 = vld [vmem:[%s497 + $0x58] sm:$0xff]
        %v928 = vld [vmem:[%s497 + $0x60] sm:$0xff]
        %v929 = vld [vmem:[%s497 + $0x68] sm:$0xff]
        %v930 = vld [vmem:[%s497 + $0x70] sm:$0xff]
        %v931 = vld [vmem:[%s497 + $0x78] sm:$0xff]
        %v932 = vld [vmem:[%s497 + $0x80] sm:$0xff]
        %v933 = vld [vmem:[%s497 + $0x88] sm:$0xff]
        %v934 = vld [vmem:[%s497 + $0x90] sm:$0xff]
        %v935 = vld [vmem:[%s497 + $0x98] sm:$0xff]
        %v936 = vld [vmem:[%s497 + $0xa0] sm:$0xff]
        %v937 = vld [vmem:[%s497 + $0xa8] sm:$0xff]
        %v938 = vld [vmem:[%s497 + $0xb0] sm:$0xff]
        %v939 = vld [vmem:[%s497 + $0xb8] sm:$0xff]
        %v940 = vld [vmem:[%s497 + $0xc0] sm:$0xff]
        %v941 = vld [vmem:[%s497 + $0xc8] sm:$0xff]
        %v942 = vld [vmem:[%s497 + $0xd0] sm:$0xff]
        %v943 = vld [vmem:[%s497 + $0xd8] sm:$0xff]
        %v944 = vld [vmem:[%s497 + $0xe0] sm:$0xff]
        %v945 = vld [vmem:[%s497 + $0xe8] sm:$0xff]
        %v946 = vld [vmem:[%s497 + $0xf0] sm:$0xff]
        %v947 = vld [vmem:[%s497 + $0xf8] sm:$0xff]
        %v948 = vld [vmem:[#allocation10] sm:$0xff]
        %v949 = vld [vmem:[#allocation10 + $0x8] sm:$0xff]
        %v950 = vld [vmem:[#allocation10 + $0x10] sm:$0xff]
        %v951 = vld [vmem:[#allocation10 + $0x18] sm:$0xff]
        %v952 = vld [vmem:[#allocation10 + $0x20] sm:$0xff]
        %v953 = vld [vmem:[#allocation10 + $0x28] sm:$0xff]
        %v954 = vld [vmem:[#allocation10 + $0x30] sm:$0xff]
        %v955 = vld [vmem:[#allocation10 + $0x38] sm:$0xff]
        %v956 = vld [vmem:[#allocation10 + $0x40] sm:$0xff]
        %v957 = vld [vmem:[#allocation10 + $0x48] sm:$0xff]
        %v958 = vld [vmem:[#allocation10 + $0x50] sm:$0xff]
        %v959 = vld [vmem:[#allocation10 + $0x58] sm:$0xff]
        %v960 = vld [vmem:[#allocation10 + $0x60] sm:$0xff]
        %v961 = vld [vmem:[#allocation10 + $0x68] sm:$0xff]
        %v962 = vld [vmem:[#allocation10 + $0x70] sm:$0xff]
        %v963 = vld [vmem:[#allocation10 + $0x78] sm:$0xff]
        %v964 = vld [vmem:[#allocation10 + $0x80] sm:$0xff]
        %v965 = vld [vmem:[#allocation10 + $0x88] sm:$0xff]
        %v966 = vld [vmem:[#allocation10 + $0x90] sm:$0xff]
        %v967 = vld [vmem:[#allocation10 + $0x98] sm:$0xff]
        %v968 = vld [vmem:[#allocation10 + $0xa0] sm:$0xff]
        %v969 = vld [vmem:[#allocation10 + $0xa8] sm:$0xff]
        %v970 = vld [vmem:[#allocation10 + $0xb0] sm:$0xff]
        %v971 = vld [vmem:[#allocation10 + $0xb8] sm:$0xff]
        %v972 = vld [vmem:[#allocation10 + $0xc0] sm:$0xff]
        %v973 = vld [vmem:[#allocation10 + $0xc8] sm:$0xff]
        %v974 = vld [vmem:[#allocation10 + $0xd0] sm:$0xff]
        %v975 = vld [vmem:[#allocation10 + $0xd8] sm:$0xff]
        %v976 = vld [vmem:[#allocation10 + $0xe0] sm:$0xff]
        %v977 = vld [vmem:[#allocation10 + $0xe8] sm:$0xff]
        %v978 = vld [vmem:[#allocation10 + $0xf0] sm:$0xff]
        %v979 = vld [vmem:[#allocation10 + $0xf8] sm:$0xff]
        %v980 = vld [vmem:[#allocation10 + $0x100] sm:$0xff]
        %v981 = vld [vmem:[#allocation10 + $0x108] sm:$0xff]
        %v982 = vld [vmem:[#allocation10 + $0x110] sm:$0xff]
        %v983 = vld [vmem:[#allocation10 + $0x118] sm:$0xff]
        %v984 = vld [vmem:[#allocation10 + $0x120] sm:$0xff]
        %v985 = vld [vmem:[#allocation10 + $0x128] sm:$0xff]
        %v986 = vld [vmem:[#allocation10 + $0x130] sm:$0xff]
        %v987 = vld [vmem:[#allocation10 + $0x138] sm:$0xff]
        %v988 = vld [vmem:[#allocation10 + $0x140] sm:$0xff]
        %v989 = vld [vmem:[#allocation10 + $0x148] sm:$0xff]
        %v990 = vld [vmem:[#allocation10 + $0x150] sm:$0xff]
        %v991 = vld [vmem:[#allocation10 + $0x158] sm:$0xff]
        %v992 = vld [vmem:[#allocation10 + $0x160] sm:$0xff]
        %v993 = vld [vmem:[#allocation10 + $0x168] sm:$0xff]
        %v994 = vld [vmem:[#allocation10 + $0x170] sm:$0xff]
        %v995 = vld [vmem:[#allocation10 + $0x178] sm:$0xff]
        %v996 = vld [vmem:[#allocation10 + $0x180] sm:$0xff]
        %v997 = vld [vmem:[#allocation10 + $0x188] sm:$0xff]
        %v998 = vld [vmem:[#allocation10 + $0x190] sm:$0xff]
        %v999 = vld [vmem:[#allocation10 + $0x198] sm:$0xff]
        %v1000 = vld [vmem:[#allocation10 + $0x1a0] sm:$0xff]
        %v1001 = vld [vmem:[#allocation10 + $0x1a8] sm:$0xff]
        %v1002 = vld [vmem:[#allocation10 + $0x1b0] sm:$0xff]
        %v1003 = vld [vmem:[#allocation10 + $0x1b8] sm:$0xff]
        %v1004 = vld [vmem:[#allocation10 + $0x1c0] sm:$0xff]
        %v1005 = vld [vmem:[#allocation10 + $0x1c8] sm:$0xff]
        %v1006 = vld [vmem:[#allocation10 + $0x1d0] sm:$0xff]
        %v1007 = vld [vmem:[#allocation10 + $0x1d8] sm:$0xff]
        %v1008 = vld [vmem:[#allocation10 + $0x1e0] sm:$0xff]
        %v1009 = vld [vmem:[#allocation10 + $0x1e8] sm:$0xff]
        %v1010 = vld [vmem:[#allocation10 + $0x1f0] sm:$0xff]
        %v1011 = vld [vmem:[#allocation10 + $0x1f8] sm:$0xff]
        %v1012 = vld [vmem:[%s7] sm:$0x3]
        %v1014 = vlaneseq
        %v1015 = vshrl.u32 %v1014, 7
        %v1016 = vsub.s32 0, %v1015
        %v1017 = vrot.slane %v1012, %v1016
        %v1018 = vlaneseq
        %v1019 = vshrl.u32 %v1018, 7
        %v1020 = vsub.s32 1, %v1019
        %v1021 = vrot.slane %v1012, %v1020
        %1024 = vmatprep.subr.mxu0 %v979
        %1025 = vmatpush1.msra.mxu0 %v978
        %1026 = vmatprep.subr.mxu0 %v977
        %1027 = vmatpush1.msra.mxu0 %v976
        %1028 = vmatprep.subr.mxu0 %v975
        %1029 = vmatpush1.msra.mxu0 %v974
        %1030 = vmatprep.subr.mxu0 %v973
        %1031 = vmatpush1.msra.mxu0 %v972
        %1032 = vmatprep.subr.mxu0 %v971
        %1033 = vmatpush1.msra.mxu0 %v970
        %1034 = vmatprep.subr.mxu0 %v969
        %1035 = vmatpush1.msra.mxu0 %v968
        %1036 = vmatprep.subr.mxu0 %v967
        %1037 = vmatpush1.msra.mxu0 %v966
        %1038 = vmatprep.subr.mxu0 %v965
        %1039 = vmatpush1.msra.mxu0 %v964
        %1040 = vmatprep.subr.mxu0 %v963
        %1041 = vmatpush1.msra.mxu0 %v962
        %1042 = vmatprep.subr.mxu0 %v961
        %1043 = vmatpush1.msra.mxu0 %v960
        %1044 = vmatprep.subr.mxu0 %v959
        %1045 = vmatpush1.msra.mxu0 %v958
        %1046 = vmatprep.subr.mxu0 %v957
        %1047 = vmatpush1.msra.mxu0 %v956
        %1048 = vmatprep.subr.mxu0 %v955
        %1049 = vmatpush1.msra.mxu0 %v954
        %1050 = vmatprep.subr.mxu0 %v953
        %1051 = vmatpush1.msra.mxu0 %v952
        %1052 = vmatprep.subr.mxu0 %v951
        %1053 = vmatpush1.msra.mxu0 %v950
        %1054 = vmatprep.subr.mxu0 %v949
        %1055 = vmatpush1.msra.mxu0 %v948
        %1056 = vmatprep.subr.mxu0 %v1011
        %1057 = vmatpush2.msra.mxu0 %v1010
        %1058 = vmatprep.subr.mxu0 %v1009
        %1059 = vmatpush2.msra.mxu0 %v1008
        %1060 = vmatprep.subr.mxu0 %v1007
        %1061 = vmatpush2.msra.mxu0 %v1006
        %1062 = vmatprep.subr.mxu0 %v1005
        %1063 = vmatpush2.msra.mxu0 %v1004
        %1064 = vmatprep.subr.mxu0 %v1003
        %1065 = vmatpush2.msra.mxu0 %v1002
        %1066 = vmatprep.subr.mxu0 %v1001
        %1067 = vmatpush2.msra.mxu0 %v1000
        %1068 = vmatprep.subr.mxu0 %v999
        %1069 = vmatpush2.msra.mxu0 %v998
        %1070 = vmatprep.subr.mxu0 %v997
        %1071 = vmatpush2.msra.mxu0 %v996
        %1072 = vmatprep.subr.mxu0 %v995
        %1073 = vmatpush2.msra.mxu0 %v994
        %1074 = vmatprep.subr.mxu0 %v993
        %1075 = vmatpush2.msra.mxu0 %v992
        %1076 = vmatprep.subr.mxu0 %v991
        %1077 = vmatpush2.msra.mxu0 %v990
        %1078 = vmatprep.subr.mxu0 %v989
        %1079 = vmatpush2.msra.mxu0 %v988
        %1080 = vmatprep.subr.mxu0 %v987
        %1081 = vmatpush2.msra.mxu0 %v986
        %1082 = vmatprep.subr.mxu0 %v985
        %1083 = vmatpush2.msra.mxu0 %v984
        %1084 = vmatprep.subr.mxu0 %v983
        %1085 = vmatpush2.msra.mxu0 %v982
        %1086 = vmatprep.subr.mxu0 %v981
        %1087 = vmatpush2.msra.mxu0 %v980
        %1088 = vmatprep.mubr.f32.mxu0 %v917
        %1089 = vmatmul.mubr.f32.gmra.mxu0 %v916
        %v1090 = vpop.f32.mrf.mxu0
        %v1091 = vadd.f32 %v1017, %v1090
        %v1092 = vpop.f32.mrf.mxu0
        %v1093 = vadd.f32 %v1021, %v1092
        %1094 = vmatprep.mubr.f32.mxu0 %v919
        %1095 = vmatmul.mubr.f32.gmra.mxu0 %v918
        %v1096 = vpop.f32.mrf.mxu0
        %v1097 = vadd.f32 %v1017, %v1096
        %v1098 = vpop.f32.mrf.mxu0
        %v1099 = vadd.f32 %v1021, %v1098
        %1100 = vmatprep.mubr.f32.mxu0 %v921
        %1101 = vmatmul.mubr.f32.gmra.mxu0 %v920
        %v1102 = vpop.f32.mrf.mxu0
        %v1103 = vadd.f32 %v1017, %v1102
        %v1104 = vpop.f32.mrf.mxu0
        %v1105 = vadd.f32 %v1021, %v1104
        %1106 = vmatprep.mubr.f32.mxu0 %v923
        %1107 = vmatmul.mubr.f32.gmra.mxu0 %v922
        %v1108 = vpop.f32.mrf.mxu0
        %v1109 = vadd.f32 %v1017, %v1108
        %v1110 = vpop.f32.mrf.mxu0
        %v1111 = vadd.f32 %v1021, %v1110
        %1112 = vmatprep.mubr.f32.mxu0 %v925
        %1113 = vmatmul.mubr.f32.gmra.mxu0 %v924
        %v1114 = vpop.f32.mrf.mxu0
        %v1115 = vadd.f32 %v1017, %v1114
        %v1116 = vpop.f32.mrf.mxu0
        %v1117 = vadd.f32 %v1021, %v1116
        %1118 = vmatprep.mubr.f32.mxu0 %v927
        %1119 = vmatmul.mubr.f32.gmra.mxu0 %v926
        %v1120 = vpop.f32.mrf.mxu0
        %v1121 = vadd.f32 %v1017, %v1120
        %v1122 = vpop.f32.mrf.mxu0
        %v1123 = vadd.f32 %v1021, %v1122
        %1124 = vmatprep.mubr.f32.mxu0 %v929
        %1125 = vmatmul.mubr.f32.gmra.mxu0 %v928
        %v1126 = vpop.f32.mrf.mxu0
        %v1127 = vadd.f32 %v1017, %v1126
        %v1128 = vpop.f32.mrf.mxu0
        %v1129 = vadd.f32 %v1021, %v1128
        %1130 = vmatprep.mubr.f32.mxu0 %v931
        %1131 = vmatmul.mubr.f32.gmra.mxu0 %v930
        %v1132 = vpop.f32.mrf.mxu0
        %v1133 = vadd.f32 %v1017, %v1132
        %v1134 = vpop.f32.mrf.mxu0
        %v1135 = vadd.f32 %v1021, %v1134
        %1136 = vmatprep.mubr.f32.mxu0 %v933
        %1137 = vmatmul.mubr.f32.gmra.mxu0 %v932
        %v1138 = vpop.f32.mrf.mxu0
        %v1139 = vadd.f32 %v1017, %v1138
        %v1140 = vpop.f32.mrf.mxu0
        %v1141 = vadd.f32 %v1021, %v1140
        %1142 = vmatprep.mubr.f32.mxu0 %v935
        %1143 = vmatmul.mubr.f32.gmra.mxu0 %v934
        %v1144 = vpop.f32.mrf.mxu0
        %v1145 = vadd.f32 %v1017, %v1144
        %v1146 = vpop.f32.mrf.mxu0
        %v1147 = vadd.f32 %v1021, %v1146
        %1148 = vmatprep.mubr.f32.mxu0 %v937
        %1149 = vmatmul.mubr.f32.gmra.mxu0 %v936
        %v1150 = vpop.f32.mrf.mxu0
        %v1151 = vadd.f32 %v1017, %v1150
        %v1152 = vpop.f32.mrf.mxu0
        %v1153 = vadd.f32 %v1021, %v1152
        %1154 = vmatprep.mubr.f32.mxu0 %v939
        %1155 = vmatmul.mubr.f32.gmra.mxu0 %v938
        %v1156 = vpop.f32.mrf.mxu0
        %v1157 = vadd.f32 %v1017, %v1156
        %v1158 = vpop.f32.mrf.mxu0
        %v1159 = vadd.f32 %v1021, %v1158
        %1160 = vmatprep.mubr.f32.mxu0 %v941
        %1161 = vmatmul.mubr.f32.gmra.mxu0 %v940
        %v1162 = vpop.f32.mrf.mxu0
        %v1163 = vadd.f32 %v1017, %v1162
        %v1164 = vpop.f32.mrf.mxu0
        %v1165 = vadd.f32 %v1021, %v1164
        %1166 = vmatprep.mubr.f32.mxu0 %v943
        %1167 = vmatmul.mubr.f32.gmra.mxu0 %v942
        %v1168 = vpop.f32.mrf.mxu0
        %v1169 = vadd.f32 %v1017, %v1168
        %v1170 = vpop.f32.mrf.mxu0
        %v1171 = vadd.f32 %v1021, %v1170
        %1172 = vmatprep.mubr.f32.mxu0 %v945
        %1173 = vmatmul.mubr.f32.gmra.mxu0 %v944
        %v1174 = vpop.f32.mrf.mxu0
        %v1175 = vadd.f32 %v1017, %v1174
        %v1176 = vpop.f32.mrf.mxu0
        %v1177 = vadd.f32 %v1021, %v1176
        %1178 = vmatprep.mubr.f32.mxu0 %v947
        %1179 = vmatmul.mubr.f32.gmra.mxu0 %v946
        %v1180 = vpop.f32.mrf.mxu0
        %v1181 = vadd.f32 %v1017, %v1180
        %v1182 = vpop.f32.mrf.mxu0
        %v1183 = vadd.f32 %v1021, %v1182
        %1184 = vdwg.mxu0
        %1185 = vst [vmem:[%s569] sm:$0xff] %v1091
        %1186 = vst [vmem:[%s569 + $0x8] sm:$0xff] %v1093
        %1187 = vst [vmem:[%s569 + $0x10] sm:$0xff] %v1097
        %1188 = vst [vmem:[%s569 + $0x18] sm:$0xff] %v1099
        %1189 = vst [vmem:[%s569 + $0x20] sm:$0xff] %v1103
        %1190 = vst [vmem:[%s569 + $0x28] sm:$0xff] %v1105
        %1191 = vst [vmem:[%s569 + $0x30] sm:$0xff] %v1109
        %1192 = vst [vmem:[%s569 + $0x38] sm:$0xff] %v1111
        %1193 = vst [vmem:[%s569 + $0x40] sm:$0xff] %v1115
        %1194 = vst [vmem:[%s569 + $0x48] sm:$0xff] %v1117
        %1195 = vst [vmem:[%s569 + $0x50] sm:$0xff] %v1121
        %1196 = vst [vmem:[%s569 + $0x58] sm:$0xff] %v1123
        %1197 = vst [vmem:[%s569 + $0x60] sm:$0xff] %v1127
        %1198 = vst [vmem:[%s569 + $0x68] sm:$0xff] %v1129
        %1199 = vst [vmem:[%s569 + $0x70] sm:$0xff] %v1133
        %1200 = vst [vmem:[%s569 + $0x78] sm:$0xff] %v1135
        %1201 = vst [vmem:[%s569 + $0x80] sm:$0xff] %v1139
        %1202 = vst [vmem:[%s569 + $0x88] sm:$0xff] %v1141
        %1203 = vst [vmem:[%s569 + $0x90] sm:$0xff] %v1145
        %1204 = vst [vmem:[%s569 + $0x98] sm:$0xff] %v1147
        %1205 = vst [vmem:[%s569 + $0xa0] sm:$0xff] %v1151
        %1206 = vst [vmem:[%s569 + $0xa8] sm:$0xff] %v1153
        %1207 = vst [vmem:[%s569 + $0xb0] sm:$0xff] %v1157
        %1208 = vst [vmem:[%s569 + $0xb8] sm:$0xff] %v1159
        %1209 = vst [vmem:[%s569 + $0xc0] sm:$0xff] %v1163
        %1210 = vst [vmem:[%s569 + $0xc8] sm:$0xff] %v1165
        %1211 = vst [vmem:[%s569 + $0xd0] sm:$0xff] %v1169
        %1212 = vst [vmem:[%s569 + $0xd8] sm:$0xff] %v1171
        %1213 = vst [vmem:[%s569 + $0xe0] sm:$0xff] %v1175
        %1214 = vst [vmem:[%s569 + $0xe8] sm:$0xff] %v1177
        %1215 = vst [vmem:[%s569 + $0xf0] sm:$0xff] %v1181
        %1216 = vst [vmem:[%s569 + $0xf8] sm:$0xff] %v1183
        %v1217 = vld [vmem:[%s506] sm:$0xff]
        %v1218 = vld [vmem:[%s506 + $0x8] sm:$0xff]
        %v1219 = vld [vmem:[%s506 + $0x10] sm:$0xff]
        %v1220 = vld [vmem:[%s506 + $0x18] sm:$0xff]
        %v1221 = vld [vmem:[%s506 + $0x20] sm:$0xff]
        %v1222 = vld [vmem:[%s506 + $0x28] sm:$0xff]
        %v1223 = vld [vmem:[%s506 + $0x30] sm:$0xff]
        %v1224 = vld [vmem:[%s506 + $0x38] sm:$0xff]
        %v1225 = vld [vmem:[%s506 + $0x40] sm:$0xff]
        %v1226 = vld [vmem:[%s506 + $0x48] sm:$0xff]
        %v1227 = vld [vmem:[%s506 + $0x50] sm:$0xff]
        %v1228 = vld [vmem:[%s506 + $0x58] sm:$0xff]
        %v1229 = vld [vmem:[%s506 + $0x60] sm:$0xff]
        %v1230 = vld [vmem:[%s506 + $0x68] sm:$0xff]
        %v1231 = vld [vmem:[%s506 + $0x70] sm:$0xff]
        %v1232 = vld [vmem:[%s506 + $0x78] sm:$0xff]
        %v1233 = vld [vmem:[%s506 + $0x80] sm:$0xff]
        %v1234 = vld [vmem:[%s506 + $0x88] sm:$0xff]
        %v1235 = vld [vmem:[%s506 + $0x90] sm:$0xff]
        %v1236 = vld [vmem:[%s506 + $0x98] sm:$0xff]
        %v1237 = vld [vmem:[%s506 + $0xa0] sm:$0xff]
        %v1238 = vld [vmem:[%s506 + $0xa8] sm:$0xff]
        %v1239 = vld [vmem:[%s506 + $0xb0] sm:$0xff]
        %v1240 = vld [vmem:[%s506 + $0xb8] sm:$0xff]
        %v1241 = vld [vmem:[%s506 + $0xc0] sm:$0xff]
        %v1242 = vld [vmem:[%s506 + $0xc8] sm:$0xff]
        %v1243 = vld [vmem:[%s506 + $0xd0] sm:$0xff]
        %v1244 = vld [vmem:[%s506 + $0xd8] sm:$0xff]
        %v1245 = vld [vmem:[%s506 + $0xe0] sm:$0xff]
        %v1246 = vld [vmem:[%s506 + $0xe8] sm:$0xff]
        %v1247 = vld [vmem:[%s506 + $0xf0] sm:$0xff]
        %v1248 = vld [vmem:[%s506 + $0xf8] sm:$0xff]
        %v1249 = vld [vmem:[#allocation11] sm:$0xff]
        %v1250 = vld [vmem:[#allocation11 + $0x8] sm:$0xff]
        %v1251 = vld [vmem:[#allocation11 + $0x10] sm:$0xff]
        %v1252 = vld [vmem:[#allocation11 + $0x18] sm:$0xff]
        %v1253 = vld [vmem:[#allocation11 + $0x20] sm:$0xff]
        %v1254 = vld [vmem:[#allocation11 + $0x28] sm:$0xff]
        %v1255 = vld [vmem:[#allocation11 + $0x30] sm:$0xff]
        %v1256 = vld [vmem:[#allocation11 + $0x38] sm:$0xff]
        %v1257 = vld [vmem:[#allocation11 + $0x40] sm:$0xff]
        %v1258 = vld [vmem:[#allocation11 + $0x48] sm:$0xff]
        %v1259 = vld [vmem:[#allocation11 + $0x50] sm:$0xff]
        %v1260 = vld [vmem:[#allocation11 + $0x58] sm:$0xff]
        %v1261 = vld [vmem:[#allocation11 + $0x60] sm:$0xff]
        %v1262 = vld [vmem:[#allocation11 + $0x68] sm:$0xff]
        %v1263 = vld [vmem:[#allocation11 + $0x70] sm:$0xff]
        %v1264 = vld [vmem:[#allocation11 + $0x78] sm:$0xff]
        %v1265 = vld [vmem:[#allocation11 + $0x80] sm:$0xff]
        %v1266 = vld [vmem:[#allocation11 + $0x88] sm:$0xff]
        %v1267 = vld [vmem:[#allocation11 + $0x90] sm:$0xff]
        %v1268 = vld [vmem:[#allocation11 + $0x98] sm:$0xff]
        %v1269 = vld [vmem:[#allocation11 + $0xa0] sm:$0xff]
        %v1270 = vld [vmem:[#allocation11 + $0xa8] sm:$0xff]
        %v1271 = vld [vmem:[#allocation11 + $0xb0] sm:$0xff]
        %v1272 = vld [vmem:[#allocation11 + $0xb8] sm:$0xff]
        %v1273 = vld [vmem:[#allocation11 + $0xc0] sm:$0xff]
        %v1274 = vld [vmem:[#allocation11 + $0xc8] sm:$0xff]
        %v1275 = vld [vmem:[#allocation11 + $0xd0] sm:$0xff]
        %v1276 = vld [vmem:[#allocation11 + $0xd8] sm:$0xff]
        %v1277 = vld [vmem:[#allocation11 + $0xe0] sm:$0xff]
        %v1278 = vld [vmem:[#allocation11 + $0xe8] sm:$0xff]
        %v1279 = vld [vmem:[#allocation11 + $0xf0] sm:$0xff]
        %v1280 = vld [vmem:[#allocation11 + $0xf8] sm:$0xff]
        %v1281 = vld [vmem:[#allocation11 + $0x100] sm:$0xff]
        %v1282 = vld [vmem:[#allocation11 + $0x108] sm:$0xff]
        %v1283 = vld [vmem:[#allocation11 + $0x110] sm:$0xff]
        %v1284 = vld [vmem:[#allocation11 + $0x118] sm:$0xff]
        %v1285 = vld [vmem:[#allocation11 + $0x120] sm:$0xff]
        %v1286 = vld [vmem:[#allocation11 + $0x128] sm:$0xff]
        %v1287 = vld [vmem:[#allocation11 + $0x130] sm:$0xff]
        %v1288 = vld [vmem:[#allocation11 + $0x138] sm:$0xff]
        %v1289 = vld [vmem:[#allocation11 + $0x140] sm:$0xff]
        %v1290 = vld [vmem:[#allocation11 + $0x148] sm:$0xff]
        %v1291 = vld [vmem:[#allocation11 + $0x150] sm:$0xff]
        %v1292 = vld [vmem:[#allocation11 + $0x158] sm:$0xff]
        %v1293 = vld [vmem:[#allocation11 + $0x160] sm:$0xff]
        %v1294 = vld [vmem:[#allocation11 + $0x168] sm:$0xff]
        %v1295 = vld [vmem:[#allocation11 + $0x170] sm:$0xff]
        %v1296 = vld [vmem:[#allocation11 + $0x178] sm:$0xff]
        %v1297 = vld [vmem:[#allocation11 + $0x180] sm:$0xff]
        %v1298 = vld [vmem:[#allocation11 + $0x188] sm:$0xff]
        %v1299 = vld [vmem:[#allocation11 + $0x190] sm:$0xff]
        %v1300 = vld [vmem:[#allocation11 + $0x198] sm:$0xff]
        %v1301 = vld [vmem:[#allocation11 + $0x1a0] sm:$0xff]
        %v1302 = vld [vmem:[#allocation11 + $0x1a8] sm:$0xff]
        %v1303 = vld [vmem:[#allocation11 + $0x1b0] sm:$0xff]
        %v1304 = vld [vmem:[#allocation11 + $0x1b8] sm:$0xff]
        %v1305 = vld [vmem:[#allocation11 + $0x1c0] sm:$0xff]
        %v1306 = vld [vmem:[#allocation11 + $0x1c8] sm:$0xff]
        %v1307 = vld [vmem:[#allocation11 + $0x1d0] sm:$0xff]
        %v1308 = vld [vmem:[#allocation11 + $0x1d8] sm:$0xff]
        %v1309 = vld [vmem:[#allocation11 + $0x1e0] sm:$0xff]
        %v1310 = vld [vmem:[#allocation11 + $0x1e8] sm:$0xff]
        %v1311 = vld [vmem:[#allocation11 + $0x1f0] sm:$0xff]
        %v1312 = vld [vmem:[#allocation11 + $0x1f8] sm:$0xff]
        %v1313 = vld [vmem:[%s8] sm:$0x3]
        %v1315 = vlaneseq
        %v1316 = vshrl.u32 %v1315, 7
        %v1317 = vsub.s32 0, %v1316
        %v1318 = vrot.slane %v1313, %v1317
        %v1319 = vlaneseq
        %v1320 = vshrl.u32 %v1319, 7
        %v1321 = vsub.s32 1, %v1320
        %v1322 = vrot.slane %v1313, %v1321
        %1325 = vmatprep.subr.mxu0 %v1280
        %1326 = vmatpush1.msra.mxu0 %v1279
        %1327 = vmatprep.subr.mxu0 %v1278
        %1328 = vmatpush1.msra.mxu0 %v1277
        %1329 = vmatprep.subr.mxu0 %v1276
        %1330 = vmatpush1.msra.mxu0 %v1275
        %1331 = vmatprep.subr.mxu0 %v1274
        %1332 = vmatpush1.msra.mxu0 %v1273
        %1333 = vmatprep.subr.mxu0 %v1272
        %1334 = vmatpush1.msra.mxu0 %v1271
        %1335 = vmatprep.subr.mxu0 %v1270
        %1336 = vmatpush1.msra.mxu0 %v1269
        %1337 = vmatprep.subr.mxu0 %v1268
        %1338 = vmatpush1.msra.mxu0 %v1267
        %1339 = vmatprep.subr.mxu0 %v1266
        %1340 = vmatpush1.msra.mxu0 %v1265
        %1341 = vmatprep.subr.mxu0 %v1264
        %1342 = vmatpush1.msra.mxu0 %v1263
        %1343 = vmatprep.subr.mxu0 %v1262
        %1344 = vmatpush1.msra.mxu0 %v1261
        %1345 = vmatprep.subr.mxu0 %v1260
        %1346 = vmatpush1.msra.mxu0 %v1259
        %1347 = vmatprep.subr.mxu0 %v1258
        %1348 = vmatpush1.msra.mxu0 %v1257
        %1349 = vmatprep.subr.mxu0 %v1256
        %1350 = vmatpush1.msra.mxu0 %v1255
        %1351 = vmatprep.subr.mxu0 %v1254
        %1352 = vmatpush1.msra.mxu0 %v1253
        %1353 = vmatprep.subr.mxu0 %v1252
        %1354 = vmatpush1.msra.mxu0 %v1251
        %1355 = vmatprep.subr.mxu0 %v1250
        %1356 = vmatpush1.msra.mxu0 %v1249
        %1357 = vmatprep.subr.mxu0 %v1312
        %1358 = vmatpush2.msra.mxu0 %v1311
        %1359 = vmatprep.subr.mxu0 %v1310
        %1360 = vmatpush2.msra.mxu0 %v1309
        %1361 = vmatprep.subr.mxu0 %v1308
        %1362 = vmatpush2.msra.mxu0 %v1307
        %1363 = vmatprep.subr.mxu0 %v1306
        %1364 = vmatpush2.msra.mxu0 %v1305
        %1365 = vmatprep.subr.mxu0 %v1304
        %1366 = vmatpush2.msra.mxu0 %v1303
        %1367 = vmatprep.subr.mxu0 %v1302
        %1368 = vmatpush2.msra.mxu0 %v1301
        %1369 = vmatprep.subr.mxu0 %v1300
        %1370 = vmatpush2.msra.mxu0 %v1299
        %1371 = vmatprep.subr.mxu0 %v1298
        %1372 = vmatpush2.msra.mxu0 %v1297
        %1373 = vmatprep.subr.mxu0 %v1296
        %1374 = vmatpush2.msra.mxu0 %v1295
        %1375 = vmatprep.subr.mxu0 %v1294
        %1376 = vmatpush2.msra.mxu0 %v1293
        %1377 = vmatprep.subr.mxu0 %v1292
        %1378 = vmatpush2.msra.mxu0 %v1291
        %1379 = vmatprep.subr.mxu0 %v1290
        %1380 = vmatpush2.msra.mxu0 %v1289
        %1381 = vmatprep.subr.mxu0 %v1288
        %1382 = vmatpush2.msra.mxu0 %v1287
        %1383 = vmatprep.subr.mxu0 %v1286
        %1384 = vmatpush2.msra.mxu0 %v1285
        %1385 = vmatprep.subr.mxu0 %v1284
        %1386 = vmatpush2.msra.mxu0 %v1283
        %1387 = vmatprep.subr.mxu0 %v1282
        %1388 = vmatpush2.msra.mxu0 %v1281
        %1389 = vmatprep.mubr.f32.mxu0 %v1218
        %1390 = vmatmul.mubr.f32.gmra.mxu0 %v1217
        %v1391 = vpop.f32.mrf.mxu0
        %v1392 = vadd.f32 %v1318, %v1391
        %v1393 = vpop.f32.mrf.mxu0
        %v1394 = vadd.f32 %v1322, %v1393
        %1395 = vmatprep.mubr.f32.mxu0 %v1220
        %1396 = vmatmul.mubr.f32.gmra.mxu0 %v1219
        %v1397 = vpop.f32.mrf.mxu0
        %v1398 = vadd.f32 %v1318, %v1397
        %v1399 = vpop.f32.mrf.mxu0
        %v1400 = vadd.f32 %v1322, %v1399
        %1401 = vmatprep.mubr.f32.mxu0 %v1222
        %1402 = vmatmul.mubr.f32.gmra.mxu0 %v1221
        %v1403 = vpop.f32.mrf.mxu0
        %v1404 = vadd.f32 %v1318, %v1403
        %v1405 = vpop.f32.mrf.mxu0
        %v1406 = vadd.f32 %v1322, %v1405
        %1407 = vmatprep.mubr.f32.mxu0 %v1224
        %1408 = vmatmul.mubr.f32.gmra.mxu0 %v1223
        %v1409 = vpop.f32.mrf.mxu0
        %v1410 = vadd.f32 %v1318, %v1409
        %v1411 = vpop.f32.mrf.mxu0
        %v1412 = vadd.f32 %v1322, %v1411
        %1413 = vmatprep.mubr.f32.mxu0 %v1226
        %1414 = vmatmul.mubr.f32.gmra.mxu0 %v1225
        %v1415 = vpop.f32.mrf.mxu0
        %v1416 = vadd.f32 %v1318, %v1415
        %v1417 = vpop.f32.mrf.mxu0
        %v1418 = vadd.f32 %v1322, %v1417
        %1419 = vmatprep.mubr.f32.mxu0 %v1228
        %1420 = vmatmul.mubr.f32.gmra.mxu0 %v1227
        %v1421 = vpop.f32.mrf.mxu0
        %v1422 = vadd.f32 %v1318, %v1421
        %v1423 = vpop.f32.mrf.mxu0
        %v1424 = vadd.f32 %v1322, %v1423
        %1425 = vmatprep.mubr.f32.mxu0 %v1230
        %1426 = vmatmul.mubr.f32.gmra.mxu0 %v1229
        %v1427 = vpop.f32.mrf.mxu0
        %v1428 = vadd.f32 %v1318, %v1427
        %v1429 = vpop.f32.mrf.mxu0
        %v1430 = vadd.f32 %v1322, %v1429
        %1431 = vmatprep.mubr.f32.mxu0 %v1232
        %1432 = vmatmul.mubr.f32.gmra.mxu0 %v1231
        %v1433 = vpop.f32.mrf.mxu0
        %v1434 = vadd.f32 %v1318, %v1433
        %v1435 = vpop.f32.mrf.mxu0
        %v1436 = vadd.f32 %v1322, %v1435
        %1437 = vmatprep.mubr.f32.mxu0 %v1234
        %1438 = vmatmul.mubr.f32.gmra.mxu0 %v1233
        %v1439 = vpop.f32.mrf.mxu0
        %v1440 = vadd.f32 %v1318, %v1439
        %v1441 = vpop.f32.mrf.mxu0
        %v1442 = vadd.f32 %v1322, %v1441
        %1443 = vmatprep.mubr.f32.mxu0 %v1236
        %1444 = vmatmul.mubr.f32.gmra.mxu0 %v1235
        %v1445 = vpop.f32.mrf.mxu0
        %v1446 = vadd.f32 %v1318, %v1445
        %v1447 = vpop.f32.mrf.mxu0
        %v1448 = vadd.f32 %v1322, %v1447
        %1449 = vmatprep.mubr.f32.mxu0 %v1238
        %1450 = vmatmul.mubr.f32.gmra.mxu0 %v1237
        %v1451 = vpop.f32.mrf.mxu0
        %v1452 = vadd.f32 %v1318, %v1451
        %v1453 = vpop.f32.mrf.mxu0
        %v1454 = vadd.f32 %v1322, %v1453
        %1455 = vmatprep.mubr.f32.mxu0 %v1240
        %1456 = vmatmul.mubr.f32.gmra.mxu0 %v1239
        %v1457 = vpop.f32.mrf.mxu0
        %v1458 = vadd.f32 %v1318, %v1457
        %v1459 = vpop.f32.mrf.mxu0
        %v1460 = vadd.f32 %v1322, %v1459
        %1461 = vmatprep.mubr.f32.mxu0 %v1242
        %1462 = vmatmul.mubr.f32.gmra.mxu0 %v1241
        %v1463 = vpop.f32.mrf.mxu0
        %v1464 = vadd.f32 %v1318, %v1463
        %v1465 = vpop.f32.mrf.mxu0
        %v1466 = vadd.f32 %v1322, %v1465
        %1467 = vmatprep.mubr.f32.mxu0 %v1244
        %1468 = vmatmul.mubr.f32.gmra.mxu0 %v1243
        %v1469 = vpop.f32.mrf.mxu0
        %v1470 = vadd.f32 %v1318, %v1469
        %v1471 = vpop.f32.mrf.mxu0
        %v1472 = vadd.f32 %v1322, %v1471
        %1473 = vmatprep.mubr.f32.mxu0 %v1246
        %1474 = vmatmul.mubr.f32.gmra.mxu0 %v1245
        %v1475 = vpop.f32.mrf.mxu0
        %v1476 = vadd.f32 %v1318, %v1475
        %v1477 = vpop.f32.mrf.mxu0
        %v1478 = vadd.f32 %v1322, %v1477
        %1479 = vmatprep.mubr.f32.mxu0 %v1248
        %1480 = vmatmul.mubr.f32.gmra.mxu0 %v1247
        %v1481 = vpop.f32.mrf.mxu0
        %v1482 = vadd.f32 %v1318, %v1481
        %v1483 = vpop.f32.mrf.mxu0
        %v1484 = vadd.f32 %v1322, %v1483
        %1485 = vdwg.mxu0
        %1486 = vst [vmem:[%s576] sm:$0xff] %v1392
        %1487 = vst [vmem:[%s576 + $0x8] sm:$0xff] %v1394
        %1488 = vst [vmem:[%s576 + $0x10] sm:$0xff] %v1398
        %1489 = vst [vmem:[%s576 + $0x18] sm:$0xff] %v1400
        %1490 = vst [vmem:[%s576 + $0x20] sm:$0xff] %v1404
        %1491 = vst [vmem:[%s576 + $0x28] sm:$0xff] %v1406
        %1492 = vst [vmem:[%s576 + $0x30] sm:$0xff] %v1410
        %1493 = vst [vmem:[%s576 + $0x38] sm:$0xff] %v1412
        %1494 = vst [vmem:[%s576 + $0x40] sm:$0xff] %v1416
        %1495 = vst [vmem:[%s576 + $0x48] sm:$0xff] %v1418
        %1496 = vst [vmem:[%s576 + $0x50] sm:$0xff] %v1422
        %1497 = vst [vmem:[%s576 + $0x58] sm:$0xff] %v1424
        %1498 = vst [vmem:[%s576 + $0x60] sm:$0xff] %v1428
        %1499 = vst [vmem:[%s576 + $0x68] sm:$0xff] %v1430
        %1500 = vst [vmem:[%s576 + $0x70] sm:$0xff] %v1434
        %1501 = vst [vmem:[%s576 + $0x78] sm:$0xff] %v1436
        %1502 = vst [vmem:[%s576 + $0x80] sm:$0xff] %v1440
        %1503 = vst [vmem:[%s576 + $0x88] sm:$0xff] %v1442
        %1504 = vst [vmem:[%s576 + $0x90] sm:$0xff] %v1446
        %1505 = vst [vmem:[%s576 + $0x98] sm:$0xff] %v1448
        %1506 = vst [vmem:[%s576 + $0xa0] sm:$0xff] %v1452
        %1507 = vst [vmem:[%s576 + $0xa8] sm:$0xff] %v1454
        %1508 = vst [vmem:[%s576 + $0xb0] sm:$0xff] %v1458
        %1509 = vst [vmem:[%s576 + $0xb8] sm:$0xff] %v1460
        %1510 = vst [vmem:[%s576 + $0xc0] sm:$0xff] %v1464
        %1511 = vst [vmem:[%s576 + $0xc8] sm:$0xff] %v1466
        %1512 = vst [vmem:[%s576 + $0xd0] sm:$0xff] %v1470
        %1513 = vst [vmem:[%s576 + $0xd8] sm:$0xff] %v1472
        %1514 = vst [vmem:[%s576 + $0xe0] sm:$0xff] %v1476
        %1515 = vst [vmem:[%s576 + $0xe8] sm:$0xff] %v1478
        %1516 = vst [vmem:[%s576 + $0xf0] sm:$0xff] %v1482
        %1517 = vst [vmem:[%s576 + $0xf8] sm:$0xff] %v1484
        %s1518 = sand.u32 %s269, 1
        %s1519 = scalar_lea.sflag [#allocation4], %s1518
        %s1520 = sand.u32 %s269, 1
        %s1521 = smul.addr %s1520, 256
        %s1522 = scalar_lea.vmem [#allocation13], %s1521
        %s1523 = sand.u32 %s37, 1
        %s1524 = scalar_lea.sflag [#allocation15], %s1523
        %s1525 = sand.u32 %s297, 1
        %s1526 = smul.addr %s1525, 256
        %s1527 = scalar_lea.vmem [#allocation14], %s1526
        %s1528 = sand.u32 %s37, 1
        %s1529 = scalar_lea.sflag [#allocation15], %s1528
        %s1530 = sand.u32 %s325, 1
        %s1531 = smul.addr %s1530, 256
        %s1532 = scalar_lea.vmem [#allocation16], %s1531
        // Predicated region
        $region81: #{tpu_custom_call.1} parent=55 // pred_check
          %p1533 = pneg %p279
        $region82: #{tpu_custom_call.1} parent=55 // pred_check_branch
          %1535 = sbr.rel (%p1533) target = $region84
        $region83: #{tpu_custom_call.1} parent=55 // pred_region
          %s1536 = smul.u32 16, %s42
          %s1538 = ssub.s32 4096, 4096
          %1539 = vsyncadd %s1519, %s1538
          %s1540 = smul.addr %s1536, 2
          %s1541 = smul.addr %s41, 32
          %s1542 = sadd.s32 %s1540, %s1541
          %s1543 = smul.addr %s1542, 128
          %s1544 = scalar_lea.hbm %s9, %s1543
          %s1545 = sshll.u32 %s1522, 4
          %s1546 = int_to_ptr.vmem [resolvable:$true] %s1545
          %1551 = dma.vmem_to_hbm [thread:$0]  %s1546, 4096, %s1544, %s1519, 256, 256, 16
        $region84: #{tpu_custom_call.1} parent=55 // pred_fallthru
          _
        // Predicated region
        $region85: #{tpu_custom_call.1} parent=55 // pred_check
          %p1552 = pneg %p307
        $region86: #{tpu_custom_call.1} parent=55 // pred_check_branch
          %1554 = sbr.rel (%p1552) target = $region88
        $region87: #{tpu_custom_call.1} parent=55 // pred_region
          %s1555 = smul.u32 16, %s42
          %s1557 = ssub.s32 4096, 4096
          %1558 = vsyncadd %s1524, %s1557
          %s1559 = smul.addr %s1555, 2
          %s1560 = smul.addr %s41, 32
          %s1561 = sadd.s32 %s1559, %s1560
          %s1562 = smul.addr %s1561, 128
          %s1563 = scalar_lea.hbm %s10, %s1562
          %s1564 = sshll.u32 %s1527, 4
          %s1565 = int_to_ptr.vmem [resolvable:$true] %s1564
          %1570 = dma.vmem_to_hbm [thread:$0]  %s1565, 4096, %s1563, %s1524, 256, 256, 16
        $region88: #{tpu_custom_call.1} parent=55 // pred_fallthru
          _
        // Predicated region
        $region89: #{tpu_custom_call.1} parent=55 // pred_check
          %p1571 = pneg %p335
        $region90: #{tpu_custom_call.1} parent=55 // pred_check_branch
          %1573 = sbr.rel (%p1571) target = $region92
        $region91: #{tpu_custom_call.1} parent=55 // pred_region
          %s1574 = smul.u32 16, %s42
          %s1576 = ssub.s32 4096, 4096
          %1577 = vsyncadd %s1529, %s1576
          %s1578 = smul.addr %s1574, 2
          %s1579 = smul.addr %s41, 32
          %s1580 = sadd.s32 %s1578, %s1579
          %s1581 = smul.addr %s1580, 128
          %s1582 = scalar_lea.hbm %s11, %s1581
          %s1583 = sshll.u32 %s1532, 4
          %s1584 = int_to_ptr.vmem [resolvable:$true] %s1583
          %1589 = dma.vmem_to_hbm [thread:$0]  %s1584, 4096, %s1582, %s1529, 256, 256, 16
        $region92: #{tpu_custom_call.1} parent=55 // pred_fallthru
          _
      $region56: #{tpu_custom_call.1} parent=5 // pred_fallthru
        _
      %p1590 = scmp.le.s32.totalorder 2, %s32
      // Predicated region
      $region93: #{tpu_custom_call.1} parent=5 // pred_check
        %p1591 = pneg %p1590
      $region94: #{tpu_custom_call.1} parent=5 // pred_check_branch
        %1593 = sbr.rel (%p1591) target = $region96
      $region95: #{tpu_custom_call.1} parent=5 // pred_region
        %s1594 = ssub.s32 %s32, 2
        // Predicated region
        $region97: #{tpu_custom_call.1} parent=95 // pred_check
          %p1595 = pneg %p285
        $region98: #{tpu_custom_call.1} parent=95 // pred_check_branch
          %1597 = sbr.rel (%p1595) target = $region100
        $region99: #{tpu_custom_call.1} parent=95 // pred_region
          %s1598 = sand.u32 %s270, 1
          %s1599 = scalar_lea.sflag [#allocation4], %s1598
          %s1600 = sand.u32 %s270, 1
          %s1601 = smul.addr %s1600, 256
          %s1602 = scalar_lea.vmem [#allocation13], %s1601
          %1603 = dma.done %s1599, 4096
        $region100: #{tpu_custom_call.1} parent=95 // pred_fallthru
          _
        // Predicated region
        $region101: #{tpu_custom_call.1} parent=95 // pred_check
          %p1604 = pneg %p313
        $region102: #{tpu_custom_call.1} parent=95 // pred_check_branch
          %1606 = sbr.rel (%p1604) target = $region104
        $region103: #{tpu_custom_call.1} parent=95 // pred_region
          %s1607 = sand.u32 %s38, 1
          %s1608 = scalar_lea.sflag [#allocation15], %s1607
          %s1609 = sand.u32 %s298, 1
          %s1610 = smul.addr %s1609, 256
          %s1611 = scalar_lea.vmem [#allocation14], %s1610
          %1612 = dma.done %s1608, 4096
        $region104: #{tpu_custom_call.1} parent=95 // pred_fallthru
          _
        // Predicated region
        $region105: #{tpu_custom_call.1} parent=95 // pred_check
          %p1613 = pneg %p341
        $region106: #{tpu_custom_call.1} parent=95 // pred_check_branch
          %1615 = sbr.rel (%p1613) target = $region108
        $region107: #{tpu_custom_call.1} parent=95 // pred_region
          %s1616 = sand.u32 %s38, 1
          %s1617 = scalar_lea.sflag [#allocation15], %s1616
          %s1618 = sand.u32 %s326, 1
          %s1619 = smul.addr %s1618, 256
          %s1620 = scalar_lea.vmem [#allocation16], %s1619
          %1621 = dma.done %s1617, 4096
        $region108: #{tpu_custom_call.1} parent=95 // pred_fallthru
          _
      $region96: #{tpu_custom_call.1} parent=5 // pred_fallthru
        _
    $region6: #{tpu_custom_call.1} parent=1 // loop_footer
      %s36 = sadd.s32 1, %s32
    $region7: #{tpu_custom_call.1} parent=1 // loop_footer_branch
      %31 = sbr.rel target = $region3
    $region8: #{tpu_custom_call.1} parent=1 // loop_exit
      _
    %1622 = vsyncpa [#allocation3], 1
    %s1623 = scalar_lea.sflag [#allocation3], 1
    %1624 = vsyncpa %s1623, 1
    %1625 = vsyncpa [#allocation6], 1
    %s1626 = scalar_lea.sflag [#allocation6], 1
    %1627 = vsyncpa %s1626, 1
    %1628 = vsyncpa [#allocation9], 1
    %1629 = vsyncpa [#allocation12], 1
    %1630 = vsyncpa [#allocation4], 1
    %s1631 = scalar_lea.sflag [#allocation4], 1
    %1632 = vsyncpa %s1631, 1
    %1633 = vsyncpa [#allocation15], 1
    %s1634 = scalar_lea.sflag [#allocation15], 1
    %1635 = vsyncpa %s1634, 1

</llo_original>
